<compile_context>
chip_gen: v6e
topology: v6e:2x2x1
jax: 0.10.0
libtpu: 0.0.40
codegen_flags: <defaults>
</compile_context>

<pallas_src>
import math

import jax
import jax.numpy as jnp
from jax import lax
from jax.experimental import pallas as pl
from jax.experimental.pallas import tpu as pltpu  # noqa: F401  (TPU backend assumed)


def _make_mmha_kernel(B, S, D, H, dK):
    BS = B * S

    def kernel(xq_ref, xk_ref, xv_ref,
               wq_ref, bq_ref, wk_ref, bk_ref, wv_ref, bv_ref,
               wo_ref, bo_ref, o_ref):
        # Flatten batch into rows so each projection is one M=B*S MXU pass.
        # (S == 8 == f32 sublane tile, so these reshapes are layout no-ops.)
        xq = xq_ref[...].reshape(BS, D)
        xk = xk_ref[...].reshape(BS, D)
        xv = xv_ref[...].reshape(BS, D)

        # nn.Linear: x @ W.T + b.  W_t pre-transposed in the wrapper; the
        # 1/sqrt(dK) attention scale is already folded into wQ_t / bQ.
        q = (jnp.dot(xq, wq_ref[...], preferred_element_type=jnp.float32)
             + bq_ref[...]).reshape(B, S, D)
        k = (jnp.dot(xk, wk_ref[...], preferred_element_type=jnp.float32)
             + bk_ref[...]).reshape(B, S, D)
        v = (jnp.dot(xv, wv_ref[...], preferred_element_type=jnp.float32)
             + bv_ref[...]).reshape(B, S, D)

        # Causal mask built in-kernel (VPU iota+compare, no (S,S) f32 input).
        # Matches the module: triu INCLUDING the diagonal is -inf.
        row = lax.broadcasted_iota(jnp.int32, (S, S), 0)
        col = lax.broadcasted_iota(jnp.int32, (S, S), 1)
        mask = jnp.where(col >= row, jnp.float32(-jnp.inf), jnp.float32(0.0))
        mask = mask[None, :, :]  # broadcast over batch

        # Per-head attention, batched over B; einsums contract the last dims
        # so no explicit K transpose is materialized.
        ctx_heads = []
        for h in range(H):
            sl = slice(h * dK, (h + 1) * dK)
            qh = q[:, :, sl]          # (B, S, dK)
            kh = k[:, :, sl]
            vh = v[:, :, sl]

            s = jnp.einsum('bqd,bkd->bqk', qh, kh,
                           preferred_element_type=jnp.float32) + mask
            m = jnp.max(s, axis=-1, keepdims=True)
            e = jnp.exp(s - m)                                   # (B, S, S)
            l = jnp.sum(e, axis=-1, keepdims=True)               # (B, S, 1)
            # Unnormalized context; fold 1/l afterwards via the EUP
            # (approx reciprocal) — off the VALU critical path.  NaN rows
            # (fully-masked row 0) still propagate: ctx is already NaN there.
            ctx = jnp.einsum('bqk,bkd->bqd', e, vh,
                             preferred_element_type=jnp.float32)
            ctx_heads.append(ctx * pl.reciprocal(l, approx=True))
            # TODO(synk): dropout on attention probs omitted (eval-mode identity).

        # Concatenate heads once, then a single fused output projection.
        ctx_all = jnp.concatenate(ctx_heads, axis=-1).reshape(BS, D)
        out = jnp.dot(ctx_all, wo_ref[...],
                      preferred_element_type=jnp.float32) + bo_ref[...]
        o_ref[...] = out.reshape(B, S, D).astype(o_ref.dtype)

    return kernel


def masked_mha_forward(query, key, value, params):
    """query/key/value: (B, S, D) float32. Returns (B, S, D) float32."""
    B, S, D = query.shape
    H = params["h"]
    dK = D // H
    scale = 1.0 / math.sqrt(dK)

    # Wrapper-side glue (free): transpose weights to (in, out); fold the
    # attention scale into the Q projection weight AND bias.
    wq_t = params["wQ"].T * scale
    bq = (params["bQ"] * scale).reshape(1, D)
    wk_t = params["wK"].T
    bk = params["bK"].reshape(1, D)
    wv_t = params["wV"].T
    bv = params["bV"].reshape(1, D)
    wo_t = params["wO"].T
    bo = params["bO"].reshape(1, D)

    kernel = _make_mmha_kernel(B, S, D, H, dK)

    # Single invocation, no grid: every operand is a full-array VMEM block.
    # TODO(synk): at production sizes reintroduce a "parallel" batch/row-tile
    # grid axis (v7x megacore), bf16 MXU inputs, and a KV-tiled online softmax
    # sized against a 64 MiB VMEM budget with an explicit vmem_limit_bytes.
    return pl.pallas_call(
        kernel,
        out_shape=jax.ShapeDtypeStruct((B, S, D), jnp.float32),
    )(query, key, value, wq_t, bq, wk_t, bk, wv_t, bv, wo_t, bo)


def masked_mha_reference(query, key, value, params, mask):
    """Plain-JAX mirror of the PyTorch forward pass (for a sanity check)."""
    B, S, D = query.shape
    H = params["h"]
    dK = D // H

    def lin(x, w, b):
        return x @ w.T + b

    q = lin(query, params["wQ"], params["bQ"]).reshape(B, S, H, dK).transpose(0, 2, 1, 3)
    k = lin(key, params["wK"], params["bK"]).reshape(B, S, H, dK).transpose(0, 2, 1, 3)
    v = lin(value, params["wV"], params["bV"]).reshape(B, S, H, dK).transpose(0, 2, 1, 3)

    s = jnp.einsum("bhqd,bhkd->bhqk", q, k) / math.sqrt(dK)
    s = s + mask  # broadcast (S, S) over (B, H, S, S)
    p = jax.nn.softmax(s, axis=-1)
    x = jnp.einsum("bhqk,bhkd->bhqd", p, v)
    x = x.transpose(0, 2, 1, 3).reshape(B, S, D)
    return lin(x, params["wO"], params["bO"])


def init_params(key, d_model, h):
    ks = jax.random.split(key, 8)
    scale = 0.1
    return {
        "h": h,
        "wQ": scale * jax.random.normal(ks[0], (d_model, d_model), jnp.float32),
        "bQ": scale * jax.random.normal(ks[1], (d_model,), jnp.float32),
        "wK": scale * jax.random.normal(ks[2], (d_model, d_model), jnp.float32),
        "bK": scale * jax.random.normal(ks[3], (d_model,), jnp.float32),
        "wV": scale * jax.random.normal(ks[4], (d_model, d_model), jnp.float32),
        "bV": scale * jax.random.normal(ks[5], (d_model,), jnp.float32),
        "wO": scale * jax.random.normal(ks[6], (d_model, d_model), jnp.float32),
        "bO": scale * jax.random.normal(ks[7], (d_model,), jnp.float32),
    }


if __name__ == "__main__":
    config = {"dModel": 32, "h": 4, "seqlen": 8, "dropout": 0.0}
    B, S, D, H = 2, config["seqlen"], config["dModel"], config["h"]

    root = jax.random.PRNGKey(0)
    kp, kq, kk, kv = jax.random.split(root, 4)

    params = init_params(kp, D, H)

    # Mask as in the module (reference only; the kernel builds it in-kernel):
    # triu(ones) incl. diagonal -> -inf, strictly-lower -> 0.
    tri = jnp.triu(jnp.ones((S, S), jnp.float32))
    mask = jnp.where(tri == 1.0, jnp.float32(-jnp.inf), jnp.float32(0.0))

    query = jax.random.normal(kq, (B, S, D), jnp.float32)
    key_ = jax.random.normal(kk, (B, S, D), jnp.float32)
    value = jax.random.normal(kv, (B, S, D), jnp.float32)

    out = masked_mha_forward(query, key_, value, params)
    out = jax.block_until_ready(out)

    ref = masked_mha_reference(query, key_, value, params, mask)
    ref = jax.block_until_ready(ref)

    # Row 0 is NaN in both (fully-masked softmax row), matching PyTorch exactly.
    assert out.shape == (B, S, D)
    assert bool(jnp.allclose(out, ref, atol=5e-2, rtol=5e-2, equal_nan=True)), \
        "Pallas output does not match JAX reference"

    print("KERNEL_OK")
</pallas_src>

<mosaic_0001>
module attributes {stable_mosaic.version = 11 : i64} {
  func.func @kernel(%arg0: memref<2x8x32xf32, #tpu.memory_space<vmem>>, %arg1: memref<2x8x32xf32, #tpu.memory_space<vmem>>, %arg2: memref<2x8x32xf32, #tpu.memory_space<vmem>>, %arg3: memref<32x32xf32, #tpu.memory_space<vmem>>, %arg4: memref<1x32xf32, #tpu.memory_space<vmem>>, %arg5: memref<32x32xf32, #tpu.memory_space<vmem>>, %arg6: memref<1x32xf32, #tpu.memory_space<vmem>>, %arg7: memref<32x32xf32, #tpu.memory_space<vmem>>, %arg8: memref<1x32xf32, #tpu.memory_space<vmem>>, %arg9: memref<32x32xf32, #tpu.memory_space<vmem>>, %arg10: memref<1x32xf32, #tpu.memory_space<vmem>>, %arg11: memref<2x8x32xf32, #tpu.memory_space<vmem>>) attributes {dimension_semantics = [], scalar_prefetch = 0 : i64, scratch_operands = 0 : i64, tpu.core_type = #tpu.core_type<tc>} {
    %c0 = arith.constant 0 : index
    %c0_0 = arith.constant 0 : index
    %c0_1 = arith.constant 0 : index
    %0 = vector.load %arg0[%c0, %c0_0, %c0_1] : memref<2x8x32xf32, #tpu.memory_space<vmem>>, vector<2x8x32xf32>
    %1 = vector.shape_cast %0 : vector<2x8x32xf32> to vector<16x32xf32>
    %c0_2 = arith.constant 0 : index
    %c0_3 = arith.constant 0 : index
    %c0_4 = arith.constant 0 : index
    %2 = vector.load %arg1[%c0_2, %c0_3, %c0_4] : memref<2x8x32xf32, #tpu.memory_space<vmem>>, vector<2x8x32xf32>
    %3 = vector.shape_cast %2 : vector<2x8x32xf32> to vector<16x32xf32>
    %c0_5 = arith.constant 0 : index
    %c0_6 = arith.constant 0 : index
    %c0_7 = arith.constant 0 : index
    %4 = vector.load %arg2[%c0_5, %c0_6, %c0_7] : memref<2x8x32xf32, #tpu.memory_space<vmem>>, vector<2x8x32xf32>
    %5 = vector.shape_cast %4 : vector<2x8x32xf32> to vector<16x32xf32>
    %c0_8 = arith.constant 0 : index
    %c0_9 = arith.constant 0 : index
    %6 = vector.load %arg3[%c0_8, %c0_9] : memref<32x32xf32, #tpu.memory_space<vmem>>, vector<32x32xf32>
    %cst = arith.constant dense<0.000000e+00> : vector<16x32xf32>
    %7 = tpu.matmul %1, %6, %cst {dimension_numbers = #tpu.dot_dimension_numbers<[1], [0], [0], [1], [0, 0, 1, 1], [], []>} : vector<16x32xf32>, vector<32x32xf32>, vector<16x32xf32> -> vector<16x32xf32>
    %c0_10 = arith.constant 0 : index
    %c0_11 = arith.constant 0 : index
    %8 = vector.load %arg4[%c0_10, %c0_11] : memref<1x32xf32, #tpu.memory_space<vmem>>, vector<1x32xf32>
    %9 = vector.broadcast %8 : vector<1x32xf32> to vector<16x32xf32>
    %10 = arith.addf %7, %9 : vector<16x32xf32>
    %11 = vector.shape_cast %10 : vector<16x32xf32> to vector<2x8x32xf32>
    %c0_12 = arith.constant 0 : index
    %c0_13 = arith.constant 0 : index
    %12 = vector.load %arg5[%c0_12, %c0_13] : memref<32x32xf32, #tpu.memory_space<vmem>>, vector<32x32xf32>
    %cst_14 = arith.constant dense<0.000000e+00> : vector<16x32xf32>
    %13 = tpu.matmul %3, %12, %cst_14 {dimension_numbers = #tpu.dot_dimension_numbers<[1], [0], [0], [1], [0, 0, 1, 1], [], []>} : vector<16x32xf32>, vector<32x32xf32>, vector<16x32xf32> -> vector<16x32xf32>
    %c0_15 = arith.constant 0 : index
    %c0_16 = arith.constant 0 : index
    %14 = vector.load %arg6[%c0_15, %c0_16] : memref<1x32xf32, #tpu.memory_space<vmem>>, vector<1x32xf32>
    %15 = vector.broadcast %14 : vector<1x32xf32> to vector<16x32xf32>
    %16 = arith.addf %13, %15 : vector<16x32xf32>
    %17 = vector.shape_cast %16 : vector<16x32xf32> to vector<2x8x32xf32>
    %c0_17 = arith.constant 0 : index
    %c0_18 = arith.constant 0 : index
    %18 = vector.load %arg7[%c0_17, %c0_18] : memref<32x32xf32, #tpu.memory_space<vmem>>, vector<32x32xf32>
    %cst_19 = arith.constant dense<0.000000e+00> : vector<16x32xf32>
    %19 = tpu.matmul %5, %18, %cst_19 {dimension_numbers = #tpu.dot_dimension_numbers<[1], [0], [0], [1], [0, 0, 1, 1], [], []>} : vector<16x32xf32>, vector<32x32xf32>, vector<16x32xf32> -> vector<16x32xf32>
    %c0_20 = arith.constant 0 : index
    %c0_21 = arith.constant 0 : index
    %20 = vector.load %arg8[%c0_20, %c0_21] : memref<1x32xf32, #tpu.memory_space<vmem>>, vector<1x32xf32>
    %21 = vector.broadcast %20 : vector<1x32xf32> to vector<16x32xf32>
    %22 = arith.addf %19, %21 : vector<16x32xf32>
    %23 = vector.shape_cast %22 : vector<16x32xf32> to vector<2x8x32xf32>
    %24 = tpu.iota {dimensions = array<i32: 0>} : vector<8x8xi32>
    %25 = tpu.iota {dimensions = array<i32: 1>} : vector<8x8xi32>
    %26 = arith.cmpi sge, %25, %24 : vector<8x8xi32>
    %cst_22 = arith.constant 0xFF800000 : f32
    %cst_23 = arith.constant 0.000000e+00 : f32
    %27 = vector.broadcast %cst_22 : f32 to vector<8x8xf32>
    %28 = vector.broadcast %cst_23 : f32 to vector<8x8xf32>
    %29 = arith.select %26, %27, %28 : vector<8x8xi1>, vector<8x8xf32>
    %30 = vector.shape_cast %29 : vector<8x8xf32> to vector<1x8x8xf32>
    %31 = vector.extract_strided_slice %11 {offsets = [0, 0, 0], sizes = [2, 8, 8], strides = [1, 1, 1]} : vector<2x8x32xf32> to vector<2x8x8xf32>
    %32 = vector.extract_strided_slice %17 {offsets = [0, 0, 0], sizes = [2, 8, 8], strides = [1, 1, 1]} : vector<2x8x32xf32> to vector<2x8x8xf32>
    %33 = vector.extract_strided_slice %23 {offsets = [0, 0, 0], sizes = [2, 8, 8], strides = [1, 1, 1]} : vector<2x8x32xf32> to vector<2x8x8xf32>
    "tpu.trace_start"() <{level = 10 : i32, message = "bqd,bkd->bqk"}> : () -> ()
    %cst_24 = arith.constant dense<0.000000e+00> : vector<2x8x8xf32>
    %34 = tpu.matmul %31, %32, %cst_24 {dimension_numbers = #tpu.dot_dimension_numbers<[2], [2], [1], [1], [0, 0, 0, 1, 1, 1], [0], [0]>} : vector<2x8x8xf32>, vector<2x8x8xf32>, vector<2x8x8xf32> -> vector<2x8x8xf32>
    "tpu.trace_stop"() : () -> ()
    %35 = vector.broadcast %30 : vector<1x8x8xf32> to vector<2x8x8xf32>
    %36 = arith.addf %34, %35 : vector<2x8x8xf32>
    %cst_25 = arith.constant dense<0xFF800000> : vector<2x8xf32>
    %37 = vector.multi_reduction <maximumf>, %36, %cst_25 [2] : vector<2x8x8xf32> to vector<2x8xf32>
    %38 = vector.shape_cast %37 : vector<2x8xf32> to vector<2x8x1xf32>
    %39 = vector.broadcast %38 : vector<2x8x1xf32> to vector<2x8x8xf32>
    %40 = arith.subf %36, %39 : vector<2x8x8xf32>
    %41 = math.exp %40 : vector<2x8x8xf32>
    %cst_26 = arith.constant dense<0.000000e+00> : vector<2x8xf32>
    %42 = vector.multi_reduction <add>, %41, %cst_26 [2] : vector<2x8x8xf32> to vector<2x8xf32>
    %43 = vector.shape_cast %42 : vector<2x8xf32> to vector<2x8x1xf32>
    "tpu.trace_start"() <{level = 10 : i32, message = "bqk,bkd->bqd"}> : () -> ()
    %cst_27 = arith.constant dense<0.000000e+00> : vector<2x8x8xf32>
    %44 = tpu.matmul %41, %33, %cst_27 {dimension_numbers = #tpu.dot_dimension_numbers<[2], [1], [1], [2], [0, 0, 0, 1, 1, 2], [0], [0]>} : vector<2x8x8xf32>, vector<2x8x8xf32>, vector<2x8x8xf32> -> vector<2x8x8xf32>
    "tpu.trace_stop"() : () -> ()
    %45 = tpu.reciprocal %43 {approx = true} : vector<2x8x1xf32> -> vector<2x8x1xf32>
    %46 = vector.broadcast %45 : vector<2x8x1xf32> to vector<2x8x8xf32>
    %47 = arith.mulf %44, %46 : vector<2x8x8xf32>
    %48 = vector.extract_strided_slice %11 {offsets = [0, 0, 8], sizes = [2, 8, 8], strides = [1, 1, 1]} : vector<2x8x32xf32> to vector<2x8x8xf32>
    %49 = vector.extract_strided_slice %17 {offsets = [0, 0, 8], sizes = [2, 8, 8], strides = [1, 1, 1]} : vector<2x8x32xf32> to vector<2x8x8xf32>
    %50 = vector.extract_strided_slice %23 {offsets = [0, 0, 8], sizes = [2, 8, 8], strides = [1, 1, 1]} : vector<2x8x32xf32> to vector<2x8x8xf32>
    "tpu.trace_start"() <{level = 10 : i32, message = "bqd,bkd->bqk"}> : () -> ()
    %cst_28 = arith.constant dense<0.000000e+00> : vector<2x8x8xf32>
    %51 = tpu.matmul %48, %49, %cst_28 {dimension_numbers = #tpu.dot_dimension_numbers<[2], [2], [1], [1], [0, 0, 0, 1, 1, 1], [0], [0]>} : vector<2x8x8xf32>, vector<2x8x8xf32>, vector<2x8x8xf32> -> vector<2x8x8xf32>
    "tpu.trace_stop"() : () -> ()
    %52 = vector.broadcast %30 : vector<1x8x8xf32> to vector<2x8x8xf32>
    %53 = arith.addf %51, %52 : vector<2x8x8xf32>
    %cst_29 = arith.constant dense<0xFF800000> : vector<2x8xf32>
    %54 = vector.multi_reduction <maximumf>, %53, %cst_29 [2] : vector<2x8x8xf32> to vector<2x8xf32>
    %55 = vector.shape_cast %54 : vector<2x8xf32> to vector<2x8x1xf32>
    %56 = vector.broadcast %55 : vector<2x8x1xf32> to vector<2x8x8xf32>
    %57 = arith.subf %53, %56 : vector<2x8x8xf32>
    %58 = math.exp %57 : vector<2x8x8xf32>
    %cst_30 = arith.constant dense<0.000000e+00> : vector<2x8xf32>
    %59 = vector.multi_reduction <add>, %58, %cst_30 [2] : vector<2x8x8xf32> to vector<2x8xf32>
    %60 = vector.shape_cast %59 : vector<2x8xf32> to vector<2x8x1xf32>
    "tpu.trace_start"() <{level = 10 : i32, message = "bqk,bkd->bqd"}> : () -> ()
    %cst_31 = arith.constant dense<0.000000e+00> : vector<2x8x8xf32>
    %61 = tpu.matmul %58, %50, %cst_31 {dimension_numbers = #tpu.dot_dimension_numbers<[2], [1], [1], [2], [0, 0, 0, 1, 1, 2], [0], [0]>} : vector<2x8x8xf32>, vector<2x8x8xf32>, vector<2x8x8xf32> -> vector<2x8x8xf32>
    "tpu.trace_stop"() : () -> ()
    %62 = tpu.reciprocal %60 {approx = true} : vector<2x8x1xf32> -> vector<2x8x1xf32>
    %63 = vector.broadcast %62 : vector<2x8x1xf32> to vector<2x8x8xf32>
    %64 = arith.mulf %61, %63 : vector<2x8x8xf32>
    %65 = vector.extract_strided_slice %11 {offsets = [0, 0, 16], sizes = [2, 8, 8], strides = [1, 1, 1]} : vector<2x8x32xf32> to vector<2x8x8xf32>
    %66 = vector.extract_strided_slice %17 {offsets = [0, 0, 16], sizes = [2, 8, 8], strides = [1, 1, 1]} : vector<2x8x32xf32> to vector<2x8x8xf32>
    %67 = vector.extract_strided_slice %23 {offsets = [0, 0, 16], sizes = [2, 8, 8], strides = [1, 1, 1]} : vector<2x8x32xf32> to vector<2x8x8xf32>
    "tpu.trace_start"() <{level = 10 : i32, message = "bqd,bkd->bqk"}> : () -> ()
    %cst_32 = arith.constant dense<0.000000e+00> : vector<2x8x8xf32>
    %68 = tpu.matmul %65, %66, %cst_32 {dimension_numbers = #tpu.dot_dimension_numbers<[2], [2], [1], [1], [0, 0, 0, 1, 1, 1], [0], [0]>} : vector<2x8x8xf32>, vector<2x8x8xf32>, vector<2x8x8xf32> -> vector<2x8x8xf32>
    "tpu.trace_stop"() : () -> ()
    %69 = vector.broadcast %30 : vector<1x8x8xf32> to vector<2x8x8xf32>
    %70 = arith.addf %68, %69 : vector<2x8x8xf32>
    %cst_33 = arith.constant dense<0xFF800000> : vector<2x8xf32>
    %71 = vector.multi_reduction <maximumf>, %70, %cst_33 [2] : vector<2x8x8xf32> to vector<2x8xf32>
    %72 = vector.shape_cast %71 : vector<2x8xf32> to vector<2x8x1xf32>
    %73 = vector.broadcast %72 : vector<2x8x1xf32> to vector<2x8x8xf32>
    %74 = arith.subf %70, %73 : vector<2x8x8xf32>
    %75 = math.exp %74 : vector<2x8x8xf32>
    %cst_34 = arith.constant dense<0.000000e+00> : vector<2x8xf32>
    %76 = vector.multi_reduction <add>, %75, %cst_34 [2] : vector<2x8x8xf32> to vector<2x8xf32>
    %77 = vector.shape_cast %76 : vector<2x8xf32> to vector<2x8x1xf32>
    "tpu.trace_start"() <{level = 10 : i32, message = "bqk,bkd->bqd"}> : () -> ()
    %cst_35 = arith.constant dense<0.000000e+00> : vector<2x8x8xf32>
    %78 = tpu.matmul %75, %67, %cst_35 {dimension_numbers = #tpu.dot_dimension_numbers<[2], [1], [1], [2], [0, 0, 0, 1, 1, 2], [0], [0]>} : vector<2x8x8xf32>, vector<2x8x8xf32>, vector<2x8x8xf32> -> vector<2x8x8xf32>
    "tpu.trace_stop"() : () -> ()
    %79 = tpu.reciprocal %77 {approx = true} : vector<2x8x1xf32> -> vector<2x8x1xf32>
    %80 = vector.broadcast %79 : vector<2x8x1xf32> to vector<2x8x8xf32>
    %81 = arith.mulf %78, %80 : vector<2x8x8xf32>
    %82 = vector.extract_strided_slice %11 {offsets = [0, 0, 24], sizes = [2, 8, 8], strides = [1, 1, 1]} : vector<2x8x32xf32> to vector<2x8x8xf32>
    %83 = vector.extract_strided_slice %17 {offsets = [0, 0, 24], sizes = [2, 8, 8], strides = [1, 1, 1]} : vector<2x8x32xf32> to vector<2x8x8xf32>
    %84 = vector.extract_strided_slice %23 {offsets = [0, 0, 24], sizes = [2, 8, 8], strides = [1, 1, 1]} : vector<2x8x32xf32> to vector<2x8x8xf32>
    "tpu.trace_start"() <{level = 10 : i32, message = "bqd,bkd->bqk"}> : () -> ()
    %cst_36 = arith.constant dense<0.000000e+00> : vector<2x8x8xf32>
    %85 = tpu.matmul %82, %83, %cst_36 {dimension_numbers = #tpu.dot_dimension_numbers<[2], [2], [1], [1], [0, 0, 0, 1, 1, 1], [0], [0]>} : vector<2x8x8xf32>, vector<2x8x8xf32>, vector<2x8x8xf32> -> vector<2x8x8xf32>
    "tpu.trace_stop"() : () -> ()
    %86 = vector.broadcast %30 : vector<1x8x8xf32> to vector<2x8x8xf32>
    %87 = arith.addf %85, %86 : vector<2x8x8xf32>
    %cst_37 = arith.constant dense<0xFF800000> : vector<2x8xf32>
    %88 = vector.multi_reduction <maximumf>, %87, %cst_37 [2] : vector<2x8x8xf32> to vector<2x8xf32>
    %89 = vector.shape_cast %88 : vector<2x8xf32> to vector<2x8x1xf32>
    %90 = vector.broadcast %89 : vector<2x8x1xf32> to vector<2x8x8xf32>
    %91 = arith.subf %87, %90 : vector<2x8x8xf32>
    %92 = math.exp %91 : vector<2x8x8xf32>
    %cst_38 = arith.constant dense<0.000000e+00> : vector<2x8xf32>
    %93 = vector.multi_reduction <add>, %92, %cst_38 [2] : vector<2x8x8xf32> to vector<2x8xf32>
    %94 = vector.shape_cast %93 : vector<2x8xf32> to vector<2x8x1xf32>
    "tpu.trace_start"() <{level = 10 : i32, message = "bqk,bkd->bqd"}> : () -> ()
    %cst_39 = arith.constant dense<0.000000e+00> : vector<2x8x8xf32>
    %95 = tpu.matmul %92, %84, %cst_39 {dimension_numbers = #tpu.dot_dimension_numbers<[2], [1], [1], [2], [0, 0, 0, 1, 1, 2], [0], [0]>} : vector<2x8x8xf32>, vector<2x8x8xf32>, vector<2x8x8xf32> -> vector<2x8x8xf32>
    "tpu.trace_stop"() : () -> ()
    %96 = tpu.reciprocal %94 {approx = true} : vector<2x8x1xf32> -> vector<2x8x1xf32>
    %97 = vector.broadcast %96 : vector<2x8x1xf32> to vector<2x8x8xf32>
    %98 = arith.mulf %95, %97 : vector<2x8x8xf32>
    %99 = tpu.concatenate %47, %64, %81, %98 in 2 : vector<2x8x8xf32>, vector<2x8x8xf32>, vector<2x8x8xf32>, vector<2x8x8xf32> -> vector<2x8x32xf32>
    %100 = vector.shape_cast %99 : vector<2x8x32xf32> to vector<16x32xf32>
    %c0_40 = arith.constant 0 : index
    %c0_41 = arith.constant 0 : index
    %101 = vector.load %arg9[%c0_40, %c0_41] : memref<32x32xf32, #tpu.memory_space<vmem>>, vector<32x32xf32>
    %cst_42 = arith.constant dense<0.000000e+00> : vector<16x32xf32>
    %102 = tpu.matmul %100, %101, %cst_42 {dimension_numbers = #tpu.dot_dimension_numbers<[1], [0], [0], [1], [0, 0, 1, 1], [], []>} : vector<16x32xf32>, vector<32x32xf32>, vector<16x32xf32> -> vector<16x32xf32>
    %c0_43 = arith.constant 0 : index
    %c0_44 = arith.constant 0 : index
    %103 = vector.load %arg10[%c0_43, %c0_44] : memref<1x32xf32, #tpu.memory_space<vmem>>, vector<1x32xf32>
    %104 = vector.broadcast %103 : vector<1x32xf32> to vector<16x32xf32>
    %105 = arith.addf %102, %104 : vector<16x32xf32>
    %106 = vector.shape_cast %105 : vector<16x32xf32> to vector<2x8x32xf32>
    %c0_45 = arith.constant 0 : index
    %c0_46 = arith.constant 0 : index
    %c0_47 = arith.constant 0 : index
    %107 = vector.load %arg11[%c0_45, %c0_46, %c0_47] : memref<2x8x32xf32, #tpu.memory_space<vmem>>, vector<2x8x32xf32>
    tpu.vector_store %arg11[%c0_45, %c0_46, %c0_47], %106 {strides = array<i32>} : memref<2x8x32xf32, #tpu.memory_space<vmem>>, vector<2x8x32xf32>,
    return
  }
}

</mosaic_0001>

<llo_original>
// kernel: tpu_custom_call.1
$region0: #{tpu_custom_call.1}
  #allocation0 [shape = 'u32[]', space=smem, size = 0x4, offset = 0x4, fixed_abs, tag = 'smem constant byte address 0x4 - core index']
  #allocation1 [shape = 'u32[144,128]{1,0:T(1,128)}', space=vmem, size = 0x12000, scoped, tag = 'internal scratch']
  %s0 = inlined_call_operand.hbm [shape: f32[2,8,32], index: 0, kind: input, shape index: {}]
  %s1 = inlined_call_operand.hbm [shape: f32[2,8,32], index: 1, kind: input, shape index: {}]
  %s2 = inlined_call_operand.hbm [shape: f32[2,8,32], index: 2, kind: input, shape index: {}]
  %s3 = inlined_call_operand.hbm [shape: f32[32,32], index: 3, kind: input, shape index: {}]
  %s4 = inlined_call_operand.vmem [shape: f32[1,32], index: 4, kind: input, shape index: {}]
  %s5 = inlined_call_operand.hbm [shape: f32[32,32], index: 5, kind: input, shape index: {}]
  %s6 = inlined_call_operand.vmem [shape: f32[1,32], index: 6, kind: input, shape index: {}]
  %s7 = inlined_call_operand.hbm [shape: f32[32,32], index: 7, kind: input, shape index: {}]
  %s8 = inlined_call_operand.vmem [shape: f32[1,32], index: 8, kind: input, shape index: {}]
  %s9 = inlined_call_operand.hbm [shape: f32[32,32], index: 9, kind: input, shape index: {}]
  %s10 = inlined_call_operand.vmem [shape: f32[1,32], index: 10, kind: input, shape index: {}]
  %s11 = inlined_call_operand.hbm [shape: f32[2,8,32], index: 11, kind: output, shape index: {}]
  %s12 = sld [smem:[#allocation0]]
  $region82: #{tpu_custom_call.1} parent=0
    _
  %s14 = ssub.s32 1, %s12
  %s15 = scalar_select 0, %s14, %s12
  $region1: #{tpu_custom_call.1} parent=0
    #allocation2 [shape = 'u8[8192]{0}', space=vmem, size = 0x2000, scoped, tag = 'input window, operand 0, single buffered']
    #allocation3 [shape = 's32[1]{0}', space=sflag, size = 0x4, scoped, tag = 'scoped memory for tpu_custom_call.1']
    #allocation4 [shape = 's32[1]{0}', space=sflag, size = 0x4, scoped, tag = 'scoped memory for tpu_custom_call.1']
    #allocation5 [shape = 'u8[8192]{0}', space=vmem, size = 0x2000, scoped, tag = 'input window, operand 1, single buffered']
    #allocation6 [shape = 's32[1]{0}', space=sflag, size = 0x4, scoped, tag = 'scoped memory for tpu_custom_call.1']
    #allocation7 [shape = 'u8[8192]{0}', space=vmem, size = 0x2000, scoped, tag = 'input window, operand 2, single buffered']
    #allocation8 [shape = 'u8[16384]{0}', space=vmem, size = 0x4000, scoped, tag = 'input window, operand 3, single buffered']
    #allocation9 [shape = 's32[1]{0}', space=sflag, size = 0x4, scoped, tag = 'scoped memory for tpu_custom_call.1']
    #allocation10 [shape = 'u8[16384]{0}', space=vmem, size = 0x4000, scoped, tag = 'input window, operand 5, single buffered']
    #allocation11 [shape = 'u8[16384]{0}', space=vmem, size = 0x4000, scoped, tag = 'input window, operand 7, single buffered']
    #allocation12 [shape = 's32[1]{0}', space=sflag, size = 0x4, scoped, tag = 'scoped memory for tpu_custom_call.1']
    #allocation13 [shape = 'u8[16384]{0}', space=vmem, size = 0x4000, scoped, tag = 'input window, operand 9, single buffered']
    #allocation14 [shape = 'u8[8192]{0}', space=vmem, size = 0x2000, scoped, tag = 'output window, operand 0, single buffered']
    %16 = vsyncpa [#allocation3], 0
    %17 = vsyncpa [#allocation6], 0
    %18 = vsyncpa [#allocation9], 0
    %19 = vsyncpa [#allocation12], 0
    %20 = vsyncpa [#allocation4], 0
    // Predicated region
    $region2: #{tpu_custom_call.1} parent=1 // pred_check
      _
    $region3: #{tpu_custom_call.1} parent=1 // pred_check_branch
      %22 = sbr.rel (0) target = $region5
    $region4: #{tpu_custom_call.1} parent=1 // pred_region
      %s24 = ssub.s32 256, 256
      %25 = vsyncadd [#allocation3], %s24
      %s26 = sshll.u32 [#allocation2], 4
      %s27 = int_to_ptr.vmem [resolvable:$true] %s26
      %32 = dma.hbm_to_vmem [thread:$0]  %s0, 256, %s27, [#allocation3], 128, 128, 8
    $region5: #{tpu_custom_call.1} parent=1 // pred_fallthru
      _
    // Predicated region
    $region6: #{tpu_custom_call.1} parent=1 // pred_check
      _
    $region7: #{tpu_custom_call.1} parent=1 // pred_check_branch
      %34 = sbr.rel (0) target = $region9
    $region8: #{tpu_custom_call.1} parent=1 // pred_region
      %s36 = ssub.s32 256, 256
      %37 = vsyncadd [#allocation6], %s36
      %s38 = sshll.u32 [#allocation5], 4
      %s39 = int_to_ptr.vmem [resolvable:$true] %s38
      %44 = dma.hbm_to_vmem [thread:$0]  %s1, 256, %s39, [#allocation6], 128, 128, 8
    $region9: #{tpu_custom_call.1} parent=1 // pred_fallthru
      _
    // Predicated region
    $region10: #{tpu_custom_call.1} parent=1 // pred_check
      _
    $region11: #{tpu_custom_call.1} parent=1 // pred_check_branch
      %46 = sbr.rel (0) target = $region13
    $region12: #{tpu_custom_call.1} parent=1 // pred_region
      %s48 = ssub.s32 256, 256
      %49 = vsyncadd [#allocation6], %s48
      %s50 = sshll.u32 [#allocation7], 4
      %s51 = int_to_ptr.vmem [resolvable:$true] %s50
      %56 = dma.hbm_to_vmem [thread:$0]  %s2, 256, %s51, [#allocation6], 128, 128, 8
    $region13: #{tpu_custom_call.1} parent=1 // pred_fallthru
      _
    // Predicated region
    $region14: #{tpu_custom_call.1} parent=1 // pred_check
      _
    $region15: #{tpu_custom_call.1} parent=1 // pred_check_branch
      %58 = sbr.rel (0) target = $region17
    $region16: #{tpu_custom_call.1} parent=1 // pred_region
      %s60 = ssub.s32 512, 512
      %61 = vsyncadd [#allocation9], %s60
      %s62 = sshll.u32 [#allocation8], 4
      %s63 = int_to_ptr.vmem [resolvable:$true] %s62
      %68 = dma.hbm_to_vmem [thread:$0]  %s3, 512, %s63, [#allocation9], 128, 128, 8
    $region17: #{tpu_custom_call.1} parent=1 // pred_fallthru
      _
    // Predicated region
    $region18: #{tpu_custom_call.1} parent=1 // pred_check
      _
    $region19: #{tpu_custom_call.1} parent=1 // pred_check_branch
      %70 = sbr.rel (0) target = $region21
    $region20: #{tpu_custom_call.1} parent=1 // pred_region
      _
    $region21: #{tpu_custom_call.1} parent=1 // pred_fallthru
      _
    // Predicated region
    $region22: #{tpu_custom_call.1} parent=1 // pred_check
      _
    $region23: #{tpu_custom_call.1} parent=1 // pred_check_branch
      %72 = sbr.rel (0) target = $region25
    $region24: #{tpu_custom_call.1} parent=1 // pred_region
      %s74 = ssub.s32 512, 512
      %75 = vsyncadd [#allocation9], %s74
      %s76 = sshll.u32 [#allocation10], 4
      %s77 = int_to_ptr.vmem [resolvable:$true] %s76
      %82 = dma.hbm_to_vmem [thread:$0]  %s5, 512, %s77, [#allocation9], 128, 128, 8
    $region25: #{tpu_custom_call.1} parent=1 // pred_fallthru
      _
    // Predicated region
    $region26: #{tpu_custom_call.1} parent=1 // pred_check
      _
    $region27: #{tpu_custom_call.1} parent=1 // pred_check_branch
      %84 = sbr.rel (0) target = $region29
    $region28: #{tpu_custom_call.1} parent=1 // pred_region
      _
    $region29: #{tpu_custom_call.1} parent=1 // pred_fallthru
      _
    // Predicated region
    $region30: #{tpu_custom_call.1} parent=1 // pred_check
      _
    $region31: #{tpu_custom_call.1} parent=1 // pred_check_branch
      %86 = sbr.rel (0) target = $region33
    $region32: #{tpu_custom_call.1} parent=1 // pred_region
      %s88 = ssub.s32 512, 512
      %89 = vsyncadd [#allocation12], %s88
      %s90 = sshll.u32 [#allocation11], 4
      %s91 = int_to_ptr.vmem [resolvable:$true] %s90
      %96 = dma.hbm_to_vmem [thread:$0]  %s7, 512, %s91, [#allocation12], 128, 128, 8
    $region33: #{tpu_custom_call.1} parent=1 // pred_fallthru
      _
    // Predicated region
    $region34: #{tpu_custom_call.1} parent=1 // pred_check
      _
    $region35: #{tpu_custom_call.1} parent=1 // pred_check_branch
      %98 = sbr.rel (0) target = $region37
    $region36: #{tpu_custom_call.1} parent=1 // pred_region
      _
    $region37: #{tpu_custom_call.1} parent=1 // pred_fallthru
      _
    // Predicated region
    $region38: #{tpu_custom_call.1} parent=1 // pred_check
      _
    $region39: #{tpu_custom_call.1} parent=1 // pred_check_branch
      %100 = sbr.rel (0) target = $region41
    $region40: #{tpu_custom_call.1} parent=1 // pred_region
      %s102 = ssub.s32 512, 512
      %103 = vsyncadd [#allocation12], %s102
      %s104 = sshll.u32 [#allocation13], 4
      %s105 = int_to_ptr.vmem [resolvable:$true] %s104
      %110 = dma.hbm_to_vmem [thread:$0]  %s9, 512, %s105, [#allocation12], 128, 128, 8
    $region41: #{tpu_custom_call.1} parent=1 // pred_fallthru
      _
    // Predicated region
    $region42: #{tpu_custom_call.1} parent=1 // pred_check
      _
    $region43: #{tpu_custom_call.1} parent=1 // pred_check_branch
      %112 = sbr.rel (0) target = $region45
    $region44: #{tpu_custom_call.1} parent=1 // pred_region
      _
    $region45: #{tpu_custom_call.1} parent=1 // pred_fallthru
      _
    // Predicated region
    $region46: #{tpu_custom_call.1} parent=1 // pred_check
      _
    $region47: #{tpu_custom_call.1} parent=1 // pred_check_branch
      %114 = sbr.rel (0) target = $region49
    $region48: #{tpu_custom_call.1} parent=1 // pred_region
      %115 = dma.done [#allocation3], 256
    $region49: #{tpu_custom_call.1} parent=1 // pred_fallthru
      _
    // Predicated region
    $region50: #{tpu_custom_call.1} parent=1 // pred_check
      _
    $region51: #{tpu_custom_call.1} parent=1 // pred_check_branch
      %117 = sbr.rel (0) target = $region53
    $region52: #{tpu_custom_call.1} parent=1 // pred_region
      %118 = dma.done [#allocation6], 256
    $region53: #{tpu_custom_call.1} parent=1 // pred_fallthru
      _
    // Predicated region
    $region54: #{tpu_custom_call.1} parent=1 // pred_check
      _
    $region55: #{tpu_custom_call.1} parent=1 // pred_check_branch
      %120 = sbr.rel (0) target = $region57
    $region56: #{tpu_custom_call.1} parent=1 // pred_region
      %121 = dma.done [#allocation6], 256
    $region57: #{tpu_custom_call.1} parent=1 // pred_fallthru
      _
    // Predicated region
    $region58: #{tpu_custom_call.1} parent=1 // pred_check
      _
    $region59: #{tpu_custom_call.1} parent=1 // pred_check_branch
      %123 = sbr.rel (0) target = $region61
    $region60: #{tpu_custom_call.1} parent=1 // pred_region
      %124 = dma.done [#allocation9], 512
    $region61: #{tpu_custom_call.1} parent=1 // pred_fallthru
      _
    // Predicated region
    $region62: #{tpu_custom_call.1} parent=1 // pred_check
      _
    $region63: #{tpu_custom_call.1} parent=1 // pred_check_branch
      %126 = sbr.rel (0) target = $region65
    $region64: #{tpu_custom_call.1} parent=1 // pred_region
      %127 = dma.done [#allocation9], 512
    $region65: #{tpu_custom_call.1} parent=1 // pred_fallthru
      _
    // Predicated region
    $region66: #{tpu_custom_call.1} parent=1 // pred_check
      _
    $region67: #{tpu_custom_call.1} parent=1 // pred_check_branch
      %129 = sbr.rel (0) target = $region69
    $region68: #{tpu_custom_call.1} parent=1 // pred_region
      %130 = dma.done [#allocation12], 512
    $region69: #{tpu_custom_call.1} parent=1 // pred_fallthru
      _
    // Predicated region
    $region70: #{tpu_custom_call.1} parent=1 // pred_check
      _
    $region71: #{tpu_custom_call.1} parent=1 // pred_check_branch
      %132 = sbr.rel (0) target = $region73
    $region72: #{tpu_custom_call.1} parent=1 // pred_region
      %133 = dma.done [#allocation12], 512
    $region73: #{tpu_custom_call.1} parent=1 // pred_fallthru
      _
    %v134 = vld [vmem:[#allocation2] sm:$0xff]
    %v135 = vld [vmem:[#allocation2 + $0x8] sm:$0xff]
    %v136 = vld [vmem:[#allocation5] sm:$0xff]
    %v137 = vld [vmem:[#allocation5 + $0x8] sm:$0xff]
    %v138 = vld [vmem:[#allocation7] sm:$0xff]
    %v139 = vld [vmem:[#allocation7 + $0x8] sm:$0xff]
    %v140 = vld [vmem:[#allocation8] sm:$0xff]
    %v141 = vld [vmem:[#allocation8 + $0x8] sm:$0xff]
    %v142 = vld [vmem:[#allocation8 + $0x10] sm:$0xff]
    %v143 = vld [vmem:[#allocation8 + $0x18] sm:$0xff]
    %v144 = vld [vmem:[%s4] sm:$0x1]
    %v146 = vlaneseq
    %v147 = vshrl.u32 %v146, 7
    %v148 = vsub.s32 0, %v147
    %v149 = vrot.slane %v144, %v148
    %vm151 = vcmask 261120
    %v153 = vsel %vm151, %v134, 0
    %v156 = vsel %vm151, %v135, 0
    %158 = vmatprep.subr.mxu0 0.0
    %159 = vmatpush1.msra.mxu0 0.0
    %160 = vmatprep.subr.mxu0 0.0
    %161 = vmatpush1.msra.mxu0 0.0
    %162 = vmatprep.subr.mxu0 0.0
    %163 = vmatpush1.msra.mxu0 0.0
    %164 = vmatprep.subr.mxu0 0.0
    %165 = vmatpush1.msra.mxu0 0.0
    %166 = vmatprep.subr.mxu0 0.0
    %167 = vmatpush1.msra.mxu0 0.0
    %168 = vmatprep.subr.mxu0 0.0
    %169 = vmatpush1.msra.mxu0 0.0
    %170 = vmatprep.subr.mxu0 0.0
    %171 = vmatpush1.msra.mxu0 0.0
    %172 = vmatprep.subr.mxu0 0.0
    %173 = vmatpush1.msra.mxu0 0.0
    %174 = vmatprep.subr.mxu0 0.0
    %175 = vmatpush1.msra.mxu0 0.0
    %176 = vmatprep.subr.mxu0 0.0
    %177 = vmatpush1.msra.mxu0 0.0
    %178 = vmatprep.subr.mxu0 0.0
    %179 = vmatpush1.msra.mxu0 0.0
    %180 = vmatprep.subr.mxu0 0.0
    %181 = vmatpush1.msra.mxu0 0.0
    %182 = vmatprep.subr.mxu0 0.0
    %183 = vmatpush1.msra.mxu0 %v143
    %184 = vmatprep.subr.mxu0 0.0
    %185 = vmatpush1.msra.mxu0 %v142
    %186 = vmatprep.subr.mxu0 0.0
    %187 = vmatpush1.msra.mxu0 %v141
    %188 = vmatprep.subr.mxu0 0.0
    %189 = vmatpush1.msra.mxu0 %v140
    %190 = vmatprep.subr.mxu0 0.0
    %191 = vmatpush2.msra.mxu0 0.0
    %192 = vmatprep.subr.mxu0 0.0
    %193 = vmatpush2.msra.mxu0 0.0
    %194 = vmatprep.subr.mxu0 0.0
    %195 = vmatpush2.msra.mxu0 0.0
    %196 = vmatprep.subr.mxu0 0.0
    %197 = vmatpush2.msra.mxu0 0.0
    %198 = vmatprep.subr.mxu0 0.0
    %199 = vmatpush2.msra.mxu0 0.0
    %200 = vmatprep.subr.mxu0 0.0
    %201 = vmatpush2.msra.mxu0 0.0
    %202 = vmatprep.subr.mxu0 0.0
    %203 = vmatpush2.msra.mxu0 0.0
    %204 = vmatprep.subr.mxu0 0.0
    %205 = vmatpush2.msra.mxu0 0.0
    %206 = vmatprep.subr.mxu0 0.0
    %207 = vmatpush2.msra.mxu0 0.0
    %208 = vmatprep.subr.mxu0 0.0
    %209 = vmatpush2.msra.mxu0 0.0
    %210 = vmatprep.subr.mxu0 0.0
    %211 = vmatpush2.msra.mxu0 0.0
    %212 = vmatprep.subr.mxu0 0.0
    %213 = vmatpush2.msra.mxu0 0.0
    %214 = vmatprep.subr.mxu0 0.0
    %215 = vmatpush2.msra.mxu0 0.0
    %216 = vmatprep.subr.mxu0 0.0
    %217 = vmatpush2.msra.mxu0 0.0
    %218 = vmatprep.subr.mxu0 0.0
    %219 = vmatpush2.msra.mxu0 0.0
    %220 = vmatprep.subr.mxu0 0.0
    %221 = vmatpush2.msra.mxu0 0.0
    %222 = vmatprep.mubr.f32.mxu0 0.0
    %223 = vmatmul.mubr.f32.gmra.mxu0 %v153
    %v224 = vpop.f32.mrf.mxu0
    %v225 = vadd.f32 %v149, %v224
    %v226 = vpop.f32.mrf.mxu0
    %227 = vmatprep.mubr.f32.mxu0 0.0
    %228 = vmatmul.mubr.f32.gmra.mxu0 %v156
    %v229 = vpop.f32.mrf.mxu0
    %v230 = vadd.f32 %v149, %v229
    %v231 = vpop.f32.mrf.mxu0
    %232 = vdwg.mxu0
    %v233 = vld [vmem:[#allocation10] sm:$0xff]
    %v234 = vld [vmem:[#allocation10 + $0x8] sm:$0xff]
    %v235 = vld [vmem:[#allocation10 + $0x10] sm:$0xff]
    %v236 = vld [vmem:[#allocation10 + $0x18] sm:$0xff]
    %v237 = vld [vmem:[%s6] sm:$0x1]
    %v239 = vlaneseq
    %v240 = vshrl.u32 %v239, 7
    %v241 = vsub.s32 0, %v240
    %v242 = vrot.slane %v237, %v241
    %v245 = vsel %vm151, %v136, 0
    %v248 = vsel %vm151, %v137, 0
    %250 = vmatprep.subr.mxu0 0.0
    %251 = vmatpush1.msra.mxu0 0.0
    %252 = vmatprep.subr.mxu0 0.0
    %253 = vmatpush1.msra.mxu0 0.0
    %254 = vmatprep.subr.mxu0 0.0
    %255 = vmatpush1.msra.mxu0 0.0
    %256 = vmatprep.subr.mxu0 0.0
    %257 = vmatpush1.msra.mxu0 0.0
    %258 = vmatprep.subr.mxu0 0.0
    %259 = vmatpush1.msra.mxu0 0.0
    %260 = vmatprep.subr.mxu0 0.0
    %261 = vmatpush1.msra.mxu0 0.0
    %262 = vmatprep.subr.mxu0 0.0
    %263 = vmatpush1.msra.mxu0 0.0
    %264 = vmatprep.subr.mxu0 0.0
    %265 = vmatpush1.msra.mxu0 0.0
    %266 = vmatprep.subr.mxu0 0.0
    %267 = vmatpush1.msra.mxu0 0.0
    %268 = vmatprep.subr.mxu0 0.0
    %269 = vmatpush1.msra.mxu0 0.0
    %270 = vmatprep.subr.mxu0 0.0
    %271 = vmatpush1.msra.mxu0 0.0
    %272 = vmatprep.subr.mxu0 0.0
    %273 = vmatpush1.msra.mxu0 0.0
    %274 = vmatprep.subr.mxu0 0.0
    %275 = vmatpush1.msra.mxu0 %v236
    %276 = vmatprep.subr.mxu0 0.0
    %277 = vmatpush1.msra.mxu0 %v235
    %278 = vmatprep.subr.mxu0 0.0
    %279 = vmatpush1.msra.mxu0 %v234
    %280 = vmatprep.subr.mxu0 0.0
    %281 = vmatpush1.msra.mxu0 %v233
    %282 = vmatprep.subr.mxu0 0.0
    %283 = vmatpush2.msra.mxu0 0.0
    %284 = vmatprep.subr.mxu0 0.0
    %285 = vmatpush2.msra.mxu0 0.0
    %286 = vmatprep.subr.mxu0 0.0
    %287 = vmatpush2.msra.mxu0 0.0
    %288 = vmatprep.subr.mxu0 0.0
    %289 = vmatpush2.msra.mxu0 0.0
    %290 = vmatprep.subr.mxu0 0.0
    %291 = vmatpush2.msra.mxu0 0.0
    %292 = vmatprep.subr.mxu0 0.0
    %293 = vmatpush2.msra.mxu0 0.0
    %294 = vmatprep.subr.mxu0 0.0
    %295 = vmatpush2.msra.mxu0 0.0
    %296 = vmatprep.subr.mxu0 0.0
    %297 = vmatpush2.msra.mxu0 0.0
    %298 = vmatprep.subr.mxu0 0.0
    %299 = vmatpush2.msra.mxu0 0.0
    %300 = vmatprep.subr.mxu0 0.0
    %301 = vmatpush2.msra.mxu0 0.0
    %302 = vmatprep.subr.mxu0 0.0
    %303 = vmatpush2.msra.mxu0 0.0
    %304 = vmatprep.subr.mxu0 0.0
    %305 = vmatpush2.msra.mxu0 0.0
    %306 = vmatprep.subr.mxu0 0.0
    %307 = vmatpush2.msra.mxu0 0.0
    %308 = vmatprep.subr.mxu0 0.0
    %309 = vmatpush2.msra.mxu0 0.0
    %310 = vmatprep.subr.mxu0 0.0
    %311 = vmatpush2.msra.mxu0 0.0
    %312 = vmatprep.subr.mxu0 0.0
    %313 = vmatpush2.msra.mxu0 0.0
    %314 = vmatprep.mubr.f32.mxu0 0.0
    %315 = vmatmul.mubr.f32.gmra.mxu0 %v245
    %v316 = vpop.f32.mrf.mxu0
    %v317 = vadd.f32 %v242, %v316
    %v318 = vpop.f32.mrf.mxu0
    %319 = vmatprep.mubr.f32.mxu0 0.0
    %320 = vmatmul.mubr.f32.gmra.mxu0 %v248
    %v321 = vpop.f32.mrf.mxu0
    %v322 = vadd.f32 %v242, %v321
    %v323 = vpop.f32.mrf.mxu0
    %324 = vdwg.mxu0
    %v325 = vld [vmem:[#allocation11] sm:$0xff]
    %v326 = vld [vmem:[#allocation11 + $0x8] sm:$0xff]
    %v327 = vld [vmem:[#allocation11 + $0x10] sm:$0xff]
    %v328 = vld [vmem:[#allocation11 + $0x18] sm:$0xff]
    %v329 = vld [vmem:[%s8] sm:$0x1]
    %v331 = vlaneseq
    %v332 = vshrl.u32 %v331, 7
    %v333 = vsub.s32 0, %v332
    %v334 = vrot.slane %v329, %v333
    %v337 = vsel %vm151, %v138, 0
    %v340 = vsel %vm151, %v139, 0
    %342 = vmatprep.subr.mxu0 0.0
    %343 = vmatpush1.msra.mxu0 0.0
    %344 = vmatprep.subr.mxu0 0.0
    %345 = vmatpush1.msra.mxu0 0.0
    %346 = vmatprep.subr.mxu0 0.0
    %347 = vmatpush1.msra.mxu0 0.0
    %348 = vmatprep.subr.mxu0 0.0
    %349 = vmatpush1.msra.mxu0 0.0
    %350 = vmatprep.subr.mxu0 0.0
    %351 = vmatpush1.msra.mxu0 0.0
    %352 = vmatprep.subr.mxu0 0.0
    %353 = vmatpush1.msra.mxu0 0.0
    %354 = vmatprep.subr.mxu0 0.0
    %355 = vmatpush1.msra.mxu0 0.0
    %356 = vmatprep.subr.mxu0 0.0
    %357 = vmatpush1.msra.mxu0 0.0
    %358 = vmatprep.subr.mxu0 0.0
    %359 = vmatpush1.msra.mxu0 0.0
    %360 = vmatprep.subr.mxu0 0.0
    %361 = vmatpush1.msra.mxu0 0.0
    %362 = vmatprep.subr.mxu0 0.0
    %363 = vmatpush1.msra.mxu0 0.0
    %364 = vmatprep.subr.mxu0 0.0
    %365 = vmatpush1.msra.mxu0 0.0
    %366 = vmatprep.subr.mxu0 0.0
    %367 = vmatpush1.msra.mxu0 %v328
    %368 = vmatprep.subr.mxu0 0.0
    %369 = vmatpush1.msra.mxu0 %v327
    %370 = vmatprep.subr.mxu0 0.0
    %371 = vmatpush1.msra.mxu0 %v326
    %372 = vmatprep.subr.mxu0 0.0
    %373 = vmatpush1.msra.mxu0 %v325
    %374 = vmatprep.subr.mxu0 0.0
    %375 = vmatpush2.msra.mxu0 0.0
    %376 = vmatprep.subr.mxu0 0.0
    %377 = vmatpush2.msra.mxu0 0.0
    %378 = vmatprep.subr.mxu0 0.0
    %379 = vmatpush2.msra.mxu0 0.0
    %380 = vmatprep.subr.mxu0 0.0
    %381 = vmatpush2.msra.mxu0 0.0
    %382 = vmatprep.subr.mxu0 0.0
    %383 = vmatpush2.msra.mxu0 0.0
    %384 = vmatprep.subr.mxu0 0.0
    %385 = vmatpush2.msra.mxu0 0.0
    %386 = vmatprep.subr.mxu0 0.0
    %387 = vmatpush2.msra.mxu0 0.0
    %388 = vmatprep.subr.mxu0 0.0
    %389 = vmatpush2.msra.mxu0 0.0
    %390 = vmatprep.subr.mxu0 0.0
    %391 = vmatpush2.msra.mxu0 0.0
    %392 = vmatprep.subr.mxu0 0.0
    %393 = vmatpush2.msra.mxu0 0.0
    %394 = vmatprep.subr.mxu0 0.0
    %395 = vmatpush2.msra.mxu0 0.0
    %396 = vmatprep.subr.mxu0 0.0
    %397 = vmatpush2.msra.mxu0 0.0
    %398 = vmatprep.subr.mxu0 0.0
    %399 = vmatpush2.msra.mxu0 0.0
    %400 = vmatprep.subr.mxu0 0.0
    %401 = vmatpush2.msra.mxu0 0.0
    %402 = vmatprep.subr.mxu0 0.0
    %403 = vmatpush2.msra.mxu0 0.0
    %404 = vmatprep.subr.mxu0 0.0
    %405 = vmatpush2.msra.mxu0 0.0
    %406 = vmatprep.mubr.f32.mxu0 0.0
    %407 = vmatmul.mubr.f32.gmra.mxu0 %v337
    %v408 = vpop.f32.mrf.mxu0
    %v409 = vadd.f32 %v334, %v408
    %v410 = vpop.f32.mrf.mxu0
    %411 = vmatprep.mubr.f32.mxu0 0.0
    %412 = vmatmul.mubr.f32.gmra.mxu0 %v340
    %v413 = vpop.f32.mrf.mxu0
    %v414 = vadd.f32 %v334, %v413
    %v415 = vpop.f32.mrf.mxu0
    %416 = vdwg.mxu0
    %v417 = vlaneseq
    %v418 = vshrl.u32 %v417, 7
    %v419 = vlaneseq
    %v420 = vand.u32 %v419, 127
    %vm421 = vcmp.ge.s32.totalorder %v420, %v418
    %v422 = vsel %vm421, -inf, 0.0
    %vm423 = vcmask 64512
    %v425 = vsel %vm423, %v225, 0
    %v428 = vsel %vm423, %v317, 0
    %430 = vmatprep.subr.mxu0 0.0
    %431 = vmatpush1.xpose.msra.mxu0 0.0
    %432 = vmatprep.subr.mxu0 0.0
    %433 = vmatpush1.xpose.msra.mxu0 0.0
    %434 = vmatprep.subr.mxu0 0.0
    %435 = vmatpush1.xpose.msra.mxu0 0.0
    %436 = vmatprep.subr.mxu0 0.0
    %437 = vmatpush1.xpose.msra.mxu0 0.0
    %438 = vmatprep.subr.mxu0 0.0
    %439 = vmatpush1.xpose.msra.mxu0 0.0
    %440 = vmatprep.subr.mxu0 0.0
    %441 = vmatpush1.xpose.msra.mxu0 0.0
    %442 = vmatprep.subr.mxu0 0.0
    %443 = vmatpush1.xpose.msra.mxu0 0.0
    %444 = vmatprep.subr.mxu0 0.0
    %445 = vmatpush1.xpose.msra.mxu0 0.0
    %446 = vmatprep.subr.mxu0 0.0
    %447 = vmatpush1.xpose.msra.mxu0 0.0
    %448 = vmatprep.subr.mxu0 0.0
    %449 = vmatpush1.xpose.msra.mxu0 0.0
    %450 = vmatprep.subr.mxu0 0.0
    %451 = vmatpush1.xpose.msra.mxu0 0.0
    %452 = vmatprep.subr.mxu0 0.0
    %453 = vmatpush1.xpose.msra.mxu0 0.0
    %454 = vmatprep.subr.mxu0 0.0
    %455 = vmatpush1.xpose.msra.mxu0 0.0
    %456 = vmatprep.subr.mxu0 0.0
    %457 = vmatpush1.xpose.msra.mxu0 0.0
    %458 = vmatprep.subr.mxu0 0.0
    %459 = vmatpush1.xpose.msra.mxu0 0.0
    %460 = vmatprep.subr.mxu0 0.0
    %461 = vmatpush1.xpose.msra.mxu0 %v428
    %462 = vmatprep.subr.mxu0 0.0
    %463 = vmatpush2.xpose.msra.mxu0 0.0
    %464 = vmatprep.subr.mxu0 0.0
    %465 = vmatpush2.xpose.msra.mxu0 0.0
    %466 = vmatprep.subr.mxu0 0.0
    %467 = vmatpush2.xpose.msra.mxu0 0.0
    %468 = vmatprep.subr.mxu0 0.0
    %469 = vmatpush2.xpose.msra.mxu0 0.0
    %470 = vmatprep.subr.mxu0 0.0
    %471 = vmatpush2.xpose.msra.mxu0 0.0
    %472 = vmatprep.subr.mxu0 0.0
    %473 = vmatpush2.xpose.msra.mxu0 0.0
    %474 = vmatprep.subr.mxu0 0.0
    %475 = vmatpush2.xpose.msra.mxu0 0.0
    %476 = vmatprep.subr.mxu0 0.0
    %477 = vmatpush2.xpose.msra.mxu0 0.0
    %478 = vmatprep.subr.mxu0 0.0
    %479 = vmatpush2.xpose.msra.mxu0 0.0
    %480 = vmatprep.subr.mxu0 0.0
    %481 = vmatpush2.xpose.msra.mxu0 0.0
    %482 = vmatprep.subr.mxu0 0.0
    %483 = vmatpush2.xpose.msra.mxu0 0.0
    %484 = vmatprep.subr.mxu0 0.0
    %485 = vmatpush2.xpose.msra.mxu0 0.0
    %486 = vmatprep.subr.mxu0 0.0
    %487 = vmatpush2.xpose.msra.mxu0 0.0
    %488 = vmatprep.subr.mxu0 0.0
    %489 = vmatpush2.xpose.msra.mxu0 0.0
    %490 = vmatprep.subr.mxu0 0.0
    %491 = vmatpush2.xpose.msra.mxu0 0.0
    %492 = vmatprep.subr.mxu0 0.0
    %493 = vmatpush2.xpose.msra.mxu0 0.0
    %494 = vmatprep.mubr.f32.mxu0 0.0
    %495 = vmatmul.mubr.f32.gmra.mxu0 %v425
    %v496 = vpop.f32.mrf.mxu0
    %v497 = vadd.f32 %v422, %v496
    %v498 = vpop.f32.mrf.mxu0
    %499 = vdwg.mxu0
    %v501 = vsel %vm423, %v230, 0
    %v504 = vsel %vm423, %v322, 0
    %506 = vmatprep.subr.mxu0 0.0
    %507 = vmatpush1.xpose.msra.mxu0 0.0
    %508 = vmatprep.subr.mxu0 0.0
    %509 = vmatpush1.xpose.msra.mxu0 0.0
    %510 = vmatprep.subr.mxu0 0.0
    %511 = vmatpush1.xpose.msra.mxu0 0.0
    %512 = vmatprep.subr.mxu0 0.0
    %513 = vmatpush1.xpose.msra.mxu0 0.0
    %514 = vmatprep.subr.mxu0 0.0
    %515 = vmatpush1.xpose.msra.mxu0 0.0
    %516 = vmatprep.subr.mxu0 0.0
    %517 = vmatpush1.xpose.msra.mxu0 0.0
    %518 = vmatprep.subr.mxu0 0.0
    %519 = vmatpush1.xpose.msra.mxu0 0.0
    %520 = vmatprep.subr.mxu0 0.0
    %521 = vmatpush1.xpose.msra.mxu0 0.0
    %522 = vmatprep.subr.mxu0 0.0
    %523 = vmatpush1.xpose.msra.mxu0 0.0
    %524 = vmatprep.subr.mxu0 0.0
    %525 = vmatpush1.xpose.msra.mxu0 0.0
    %526 = vmatprep.subr.mxu0 0.0
    %527 = vmatpush1.xpose.msra.mxu0 0.0
    %528 = vmatprep.subr.mxu0 0.0
    %529 = vmatpush1.xpose.msra.mxu0 0.0
    %530 = vmatprep.subr.mxu0 0.0
    %531 = vmatpush1.xpose.msra.mxu0 0.0
    %532 = vmatprep.subr.mxu0 0.0
    %533 = vmatpush1.xpose.msra.mxu0 0.0
    %534 = vmatprep.subr.mxu0 0.0
    %535 = vmatpush1.xpose.msra.mxu0 0.0
    %536 = vmatprep.subr.mxu0 0.0
    %537 = vmatpush1.xpose.msra.mxu0 %v504
    %538 = vmatprep.subr.mxu0 0.0
    %539 = vmatpush2.xpose.msra.mxu0 0.0
    %540 = vmatprep.subr.mxu0 0.0
    %541 = vmatpush2.xpose.msra.mxu0 0.0
    %542 = vmatprep.subr.mxu0 0.0
    %543 = vmatpush2.xpose.msra.mxu0 0.0
    %544 = vmatprep.subr.mxu0 0.0
    %545 = vmatpush2.xpose.msra.mxu0 0.0
    %546 = vmatprep.subr.mxu0 0.0
    %547 = vmatpush2.xpose.msra.mxu0 0.0
    %548 = vmatprep.subr.mxu0 0.0
    %549 = vmatpush2.xpose.msra.mxu0 0.0
    %550 = vmatprep.subr.mxu0 0.0
    %551 = vmatpush2.xpose.msra.mxu0 0.0
    %552 = vmatprep.subr.mxu0 0.0
    %553 = vmatpush2.xpose.msra.mxu0 0.0
    %554 = vmatprep.subr.mxu0 0.0
    %555 = vmatpush2.xpose.msra.mxu0 0.0
    %556 = vmatprep.subr.mxu0 0.0
    %557 = vmatpush2.xpose.msra.mxu0 0.0
    %558 = vmatprep.subr.mxu0 0.0
    %559 = vmatpush2.xpose.msra.mxu0 0.0
    %560 = vmatprep.subr.mxu0 0.0
    %561 = vmatpush2.xpose.msra.mxu0 0.0
    %562 = vmatprep.subr.mxu0 0.0
    %563 = vmatpush2.xpose.msra.mxu0 0.0
    %564 = vmatprep.subr.mxu0 0.0
    %565 = vmatpush2.xpose.msra.mxu0 0.0
    %566 = vmatprep.subr.mxu0 0.0
    %567 = vmatpush2.xpose.msra.mxu0 0.0
    %568 = vmatprep.subr.mxu0 0.0
    %569 = vmatpush2.xpose.msra.mxu0 0.0
    %570 = vmatprep.mubr.f32.mxu0 0.0
    %571 = vmatmul.mubr.f32.gmra.mxu0 %v501
    %v572 = vpop.f32.mrf.mxu0
    %v573 = vadd.f32 %v422, %v572
    %v574 = vpop.f32.mrf.mxu0
    %575 = vdwg.mxu0
    %v576 = vsel %vm423, %v497, -inf
    %577 = vmax.xlane.f32.xlu0 %v576
    %v578 = vpop.xlane.xlu0 %577
    %v579 = vsel %vm423, %v573, -inf
    %580 = vmax.xlane.f32.xlu0 %v579
    %v581 = vpop.xlane.xlu0 %580
    %v582 = vsub.f32 %v497, %v578
    %v583 = vsub.f32 %v573, %v581
    %v584 = vmul.f32 %v582, 1.442695
    %v585 = vpow.pop %v584
    %v586 = vmul.f32 %v583, 1.442695
    %v587 = vpow.pop %v586
    %v588 = vsel %vm423, %v585, 0.0
    %589 = vadd.xlane.f32.xlu0 %v588
    %v590 = vpop.xlane.xlu0 %589
    %v591 = vsel %vm423, %v587, 0.0
    %592 = vadd.xlane.f32.xlu0 %v591
    %v593 = vpop.xlane.xlu0 %592
    %v595 = vsel %vm423, %v585, 0
    %597 = vmatprep.subr.mxu0 0.0
    %598 = vmatpush1.msra.mxu0 0.0
    %599 = vmatprep.subr.mxu0 0.0
    %600 = vmatpush1.msra.mxu0 0.0
    %601 = vmatprep.subr.mxu0 0.0
    %602 = vmatpush1.msra.mxu0 0.0
    %603 = vmatprep.subr.mxu0 0.0
    %604 = vmatpush1.msra.mxu0 0.0
    %605 = vmatprep.subr.mxu0 0.0
    %606 = vmatpush1.msra.mxu0 0.0
    %607 = vmatprep.subr.mxu0 0.0
    %608 = vmatpush1.msra.mxu0 0.0
    %609 = vmatprep.subr.mxu0 0.0
    %610 = vmatpush1.msra.mxu0 0.0
    %611 = vmatprep.subr.mxu0 0.0
    %612 = vmatpush1.msra.mxu0 0.0
    %613 = vmatprep.subr.mxu0 0.0
    %614 = vmatpush1.msra.mxu0 0.0
    %615 = vmatprep.subr.mxu0 0.0
    %616 = vmatpush1.msra.mxu0 0.0
    %617 = vmatprep.subr.mxu0 0.0
    %618 = vmatpush1.msra.mxu0 0.0
    %619 = vmatprep.subr.mxu0 0.0
    %620 = vmatpush1.msra.mxu0 0.0
    %621 = vmatprep.subr.mxu0 0.0
    %622 = vmatpush1.msra.mxu0 0.0
    %623 = vmatprep.subr.mxu0 0.0
    %624 = vmatpush1.msra.mxu0 0.0
    %625 = vmatprep.subr.mxu0 0.0
    %626 = vmatpush1.msra.mxu0 0.0
    %627 = vmatprep.subr.mxu0 0.0
    %628 = vmatpush1.msra.mxu0 %v409
    %629 = vmatprep.subr.mxu0 0.0
    %630 = vmatpush2.msra.mxu0 0.0
    %631 = vmatprep.subr.mxu0 0.0
    %632 = vmatpush2.msra.mxu0 0.0
    %633 = vmatprep.subr.mxu0 0.0
    %634 = vmatpush2.msra.mxu0 0.0
    %635 = vmatprep.subr.mxu0 0.0
    %636 = vmatpush2.msra.mxu0 0.0
    %637 = vmatprep.subr.mxu0 0.0
    %638 = vmatpush2.msra.mxu0 0.0
    %639 = vmatprep.subr.mxu0 0.0
    %640 = vmatpush2.msra.mxu0 0.0
    %641 = vmatprep.subr.mxu0 0.0
    %642 = vmatpush2.msra.mxu0 0.0
    %643 = vmatprep.subr.mxu0 0.0
    %644 = vmatpush2.msra.mxu0 0.0
    %645 = vmatprep.subr.mxu0 0.0
    %646 = vmatpush2.msra.mxu0 0.0
    %647 = vmatprep.subr.mxu0 0.0
    %648 = vmatpush2.msra.mxu0 0.0
    %649 = vmatprep.subr.mxu0 0.0
    %650 = vmatpush2.msra.mxu0 0.0
    %651 = vmatprep.subr.mxu0 0.0
    %652 = vmatpush2.msra.mxu0 0.0
    %653 = vmatprep.subr.mxu0 0.0
    %654 = vmatpush2.msra.mxu0 0.0
    %655 = vmatprep.subr.mxu0 0.0
    %656 = vmatpush2.msra.mxu0 0.0
    %657 = vmatprep.subr.mxu0 0.0
    %658 = vmatpush2.msra.mxu0 0.0
    %659 = vmatprep.subr.mxu0 0.0
    %660 = vmatpush2.msra.mxu0 0.0
    %661 = vmatprep.mubr.f32.mxu0 0.0
    %662 = vmatmul.mubr.f32.gmra.mxu0 %v595
    %v663 = vpop.f32.mrf.mxu0
    %v664 = vadd.f32 0.0, %v663
    %v665 = vpop.f32.mrf.mxu0
    %666 = vdwg.mxu0
    %v668 = vsel %vm423, %v587, 0
    %670 = vmatprep.subr.mxu0 0.0
    %671 = vmatpush1.msra.mxu0 0.0
    %672 = vmatprep.subr.mxu0 0.0
    %673 = vmatpush1.msra.mxu0 0.0
    %674 = vmatprep.subr.mxu0 0.0
    %675 = vmatpush1.msra.mxu0 0.0
    %676 = vmatprep.subr.mxu0 0.0
    %677 = vmatpush1.msra.mxu0 0.0
    %678 = vmatprep.subr.mxu0 0.0
    %679 = vmatpush1.msra.mxu0 0.0
    %680 = vmatprep.subr.mxu0 0.0
    %681 = vmatpush1.msra.mxu0 0.0
    %682 = vmatprep.subr.mxu0 0.0
    %683 = vmatpush1.msra.mxu0 0.0
    %684 = vmatprep.subr.mxu0 0.0
    %685 = vmatpush1.msra.mxu0 0.0
    %686 = vmatprep.subr.mxu0 0.0
    %687 = vmatpush1.msra.mxu0 0.0
    %688 = vmatprep.subr.mxu0 0.0
    %689 = vmatpush1.msra.mxu0 0.0
    %690 = vmatprep.subr.mxu0 0.0
    %691 = vmatpush1.msra.mxu0 0.0
    %692 = vmatprep.subr.mxu0 0.0
    %693 = vmatpush1.msra.mxu0 0.0
    %694 = vmatprep.subr.mxu0 0.0
    %695 = vmatpush1.msra.mxu0 0.0
    %696 = vmatprep.subr.mxu0 0.0
    %697 = vmatpush1.msra.mxu0 0.0
    %698 = vmatprep.subr.mxu0 0.0
    %699 = vmatpush1.msra.mxu0 0.0
    %700 = vmatprep.subr.mxu0 0.0
    %701 = vmatpush1.msra.mxu0 %v414
    %702 = vmatprep.subr.mxu0 0.0
    %703 = vmatpush2.msra.mxu0 0.0
    %704 = vmatprep.subr.mxu0 0.0
    %705 = vmatpush2.msra.mxu0 0.0
    %706 = vmatprep.subr.mxu0 0.0
    %707 = vmatpush2.msra.mxu0 0.0
    %708 = vmatprep.subr.mxu0 0.0
    %709 = vmatpush2.msra.mxu0 0.0
    %710 = vmatprep.subr.mxu0 0.0
    %711 = vmatpush2.msra.mxu0 0.0
    %712 = vmatprep.subr.mxu0 0.0
    %713 = vmatpush2.msra.mxu0 0.0
    %714 = vmatprep.subr.mxu0 0.0
    %715 = vmatpush2.msra.mxu0 0.0
    %716 = vmatprep.subr.mxu0 0.0
    %717 = vmatpush2.msra.mxu0 0.0
    %718 = vmatprep.subr.mxu0 0.0
    %719 = vmatpush2.msra.mxu0 0.0
    %720 = vmatprep.subr.mxu0 0.0
    %721 = vmatpush2.msra.mxu0 0.0
    %722 = vmatprep.subr.mxu0 0.0
    %723 = vmatpush2.msra.mxu0 0.0
    %724 = vmatprep.subr.mxu0 0.0
    %725 = vmatpush2.msra.mxu0 0.0
    %726 = vmatprep.subr.mxu0 0.0
    %727 = vmatpush2.msra.mxu0 0.0
    %728 = vmatprep.subr.mxu0 0.0
    %729 = vmatpush2.msra.mxu0 0.0
    %730 = vmatprep.subr.mxu0 0.0
    %731 = vmatpush2.msra.mxu0 0.0
    %732 = vmatprep.subr.mxu0 0.0
    %733 = vmatpush2.msra.mxu0 0.0
    %734 = vmatprep.mubr.f32.mxu0 0.0
    %735 = vmatmul.mubr.f32.gmra.mxu0 %v668
    %v736 = vpop.f32.mrf.mxu0
    %v737 = vadd.f32 0.0, %v736
    %v738 = vpop.f32.mrf.mxu0
    %739 = vdwg.mxu0
    %v740 = vrcp.pop %v590
    %v741 = vrcp.pop %v593
    %v742 = vmul.f32 %v664, %v740
    %v743 = vmul.f32 %v737, %v741
    %744 = vrot.lane.b32.xlu0 %v225, 120
    %v745 = vpop.permute.xlu0 %744
    %746 = vrot.lane.b32.xlu0 %v317, 120
    %v747 = vpop.permute.xlu0 %746
    %v748 = vsel %vm423, %v745, 0
    %v750 = vsel %vm423, %v747, 0
    %752 = vmatprep.subr.mxu0 0.0
    %753 = vmatpush1.xpose.msra.mxu0 0.0
    %754 = vmatprep.subr.mxu0 0.0
    %755 = vmatpush1.xpose.msra.mxu0 0.0
    %756 = vmatprep.subr.mxu0 0.0
    %757 = vmatpush1.xpose.msra.mxu0 0.0
    %758 = vmatprep.subr.mxu0 0.0
    %759 = vmatpush1.xpose.msra.mxu0 0.0
    %760 = vmatprep.subr.mxu0 0.0
    %761 = vmatpush1.xpose.msra.mxu0 0.0
    %762 = vmatprep.subr.mxu0 0.0
    %763 = vmatpush1.xpose.msra.mxu0 0.0
    %764 = vmatprep.subr.mxu0 0.0
    %765 = vmatpush1.xpose.msra.mxu0 0.0
    %766 = vmatprep.subr.mxu0 0.0
    %767 = vmatpush1.xpose.msra.mxu0 0.0
    %768 = vmatprep.subr.mxu0 0.0
    %769 = vmatpush1.xpose.msra.mxu0 0.0
    %770 = vmatprep.subr.mxu0 0.0
    %771 = vmatpush1.xpose.msra.mxu0 0.0
    %772 = vmatprep.subr.mxu0 0.0
    %773 = vmatpush1.xpose.msra.mxu0 0.0
    %774 = vmatprep.subr.mxu0 0.0
    %775 = vmatpush1.xpose.msra.mxu0 0.0
    %776 = vmatprep.subr.mxu0 0.0
    %777 = vmatpush1.xpose.msra.mxu0 0.0
    %778 = vmatprep.subr.mxu0 0.0
    %779 = vmatpush1.xpose.msra.mxu0 0.0
    %780 = vmatprep.subr.mxu0 0.0
    %781 = vmatpush1.xpose.msra.mxu0 0.0
    %782 = vmatprep.subr.mxu0 0.0
    %783 = vmatpush1.xpose.msra.mxu0 %v750
    %784 = vmatprep.subr.mxu0 0.0
    %785 = vmatpush2.xpose.msra.mxu0 0.0
    %786 = vmatprep.subr.mxu0 0.0
    %787 = vmatpush2.xpose.msra.mxu0 0.0
    %788 = vmatprep.subr.mxu0 0.0
    %789 = vmatpush2.xpose.msra.mxu0 0.0
    %790 = vmatprep.subr.mxu0 0.0
    %791 = vmatpush2.xpose.msra.mxu0 0.0
    %792 = vmatprep.subr.mxu0 0.0
    %793 = vmatpush2.xpose.msra.mxu0 0.0
    %794 = vmatprep.subr.mxu0 0.0
    %795 = vmatpush2.xpose.msra.mxu0 0.0
    %796 = vmatprep.subr.mxu0 0.0
    %797 = vmatpush2.xpose.msra.mxu0 0.0
    %798 = vmatprep.subr.mxu0 0.0
    %799 = vmatpush2.xpose.msra.mxu0 0.0
    %800 = vmatprep.subr.mxu0 0.0
    %801 = vmatpush2.xpose.msra.mxu0 0.0
    %802 = vmatprep.subr.mxu0 0.0
    %803 = vmatpush2.xpose.msra.mxu0 0.0
    %804 = vmatprep.subr.mxu0 0.0
    %805 = vmatpush2.xpose.msra.mxu0 0.0
    %806 = vmatprep.subr.mxu0 0.0
    %807 = vmatpush2.xpose.msra.mxu0 0.0
    %808 = vmatprep.subr.mxu0 0.0
    %809 = vmatpush2.xpose.msra.mxu0 0.0
    %810 = vmatprep.subr.mxu0 0.0
    %811 = vmatpush2.xpose.msra.mxu0 0.0
    %812 = vmatprep.subr.mxu0 0.0
    %813 = vmatpush2.xpose.msra.mxu0 0.0
    %814 = vmatprep.subr.mxu0 0.0
    %815 = vmatpush2.xpose.msra.mxu0 0.0
    %816 = vmatprep.mubr.f32.mxu0 0.0
    %817 = vmatmul.mubr.f32.gmra.mxu0 %v748
    %v818 = vpop.f32.mrf.mxu0
    %v819 = vadd.f32 %v422, %v818
    %v820 = vpop.f32.mrf.mxu0
    %821 = vdwg.mxu0
    %822 = vrot.lane.b32.xlu0 %v230, 120
    %v823 = vpop.permute.xlu0 %822
    %824 = vrot.lane.b32.xlu0 %v322, 120
    %v825 = vpop.permute.xlu0 %824
    %v826 = vsel %vm423, %v823, 0
    %v828 = vsel %vm423, %v825, 0
    %830 = vmatprep.subr.mxu0 0.0
    %831 = vmatpush1.xpose.msra.mxu0 0.0
    %832 = vmatprep.subr.mxu0 0.0
    %833 = vmatpush1.xpose.msra.mxu0 0.0
    %834 = vmatprep.subr.mxu0 0.0
    %835 = vmatpush1.xpose.msra.mxu0 0.0
    %836 = vmatprep.subr.mxu0 0.0
    %837 = vmatpush1.xpose.msra.mxu0 0.0
    %838 = vmatprep.subr.mxu0 0.0
    %839 = vmatpush1.xpose.msra.mxu0 0.0
    %840 = vmatprep.subr.mxu0 0.0
    %841 = vmatpush1.xpose.msra.mxu0 0.0
    %842 = vmatprep.subr.mxu0 0.0
    %843 = vmatpush1.xpose.msra.mxu0 0.0
    %844 = vmatprep.subr.mxu0 0.0
    %845 = vmatpush1.xpose.msra.mxu0 0.0
    %846 = vmatprep.subr.mxu0 0.0
    %847 = vmatpush1.xpose.msra.mxu0 0.0
    %848 = vmatprep.subr.mxu0 0.0
    %849 = vmatpush1.xpose.msra.mxu0 0.0
    %850 = vmatprep.subr.mxu0 0.0
    %851 = vmatpush1.xpose.msra.mxu0 0.0
    %852 = vmatprep.subr.mxu0 0.0
    %853 = vmatpush1.xpose.msra.mxu0 0.0
    %854 = vmatprep.subr.mxu0 0.0
    %855 = vmatpush1.xpose.msra.mxu0 0.0
    %856 = vmatprep.subr.mxu0 0.0
    %857 = vmatpush1.xpose.msra.mxu0 0.0
    %858 = vmatprep.subr.mxu0 0.0
    %859 = vmatpush1.xpose.msra.mxu0 0.0
    %860 = vmatprep.subr.mxu0 0.0
    %861 = vmatpush1.xpose.msra.mxu0 %v828
    %862 = vmatprep.subr.mxu0 0.0
    %863 = vmatpush2.xpose.msra.mxu0 0.0
    %864 = vmatprep.subr.mxu0 0.0
    %865 = vmatpush2.xpose.msra.mxu0 0.0
    %866 = vmatprep.subr.mxu0 0.0
    %867 = vmatpush2.xpose.msra.mxu0 0.0
    %868 = vmatprep.subr.mxu0 0.0
    %869 = vmatpush2.xpose.msra.mxu0 0.0
    %870 = vmatprep.subr.mxu0 0.0
    %871 = vmatpush2.xpose.msra.mxu0 0.0
    %872 = vmatprep.subr.mxu0 0.0
    %873 = vmatpush2.xpose.msra.mxu0 0.0
    %874 = vmatprep.subr.mxu0 0.0
    %875 = vmatpush2.xpose.msra.mxu0 0.0
    %876 = vmatprep.subr.mxu0 0.0
    %877 = vmatpush2.xpose.msra.mxu0 0.0
    %878 = vmatprep.subr.mxu0 0.0
    %879 = vmatpush2.xpose.msra.mxu0 0.0
    %880 = vmatprep.subr.mxu0 0.0
    %881 = vmatpush2.xpose.msra.mxu0 0.0
    %882 = vmatprep.subr.mxu0 0.0
    %883 = vmatpush2.xpose.msra.mxu0 0.0
    %884 = vmatprep.subr.mxu0 0.0
    %885 = vmatpush2.xpose.msra.mxu0 0.0
    %886 = vmatprep.subr.mxu0 0.0
    %887 = vmatpush2.xpose.msra.mxu0 0.0
    %888 = vmatprep.subr.mxu0 0.0
    %889 = vmatpush2.xpose.msra.mxu0 0.0
    %890 = vmatprep.subr.mxu0 0.0
    %891 = vmatpush2.xpose.msra.mxu0 0.0
    %892 = vmatprep.subr.mxu0 0.0
    %893 = vmatpush2.xpose.msra.mxu0 0.0
    %894 = vmatprep.mubr.f32.mxu0 0.0
    %895 = vmatmul.mubr.f32.gmra.mxu0 %v826
    %v896 = vpop.f32.mrf.mxu0
    %v897 = vadd.f32 %v422, %v896
    %v898 = vpop.f32.mrf.mxu0
    %899 = vdwg.mxu0
    %v900 = vsel %vm423, %v819, -inf
    %901 = vmax.xlane.f32.xlu0 %v900
    %v902 = vpop.xlane.xlu0 %901
    %v903 = vsel %vm423, %v897, -inf
    %904 = vmax.xlane.f32.xlu0 %v903
    %v905 = vpop.xlane.xlu0 %904
    %v906 = vsub.f32 %v819, %v902
    %v907 = vsub.f32 %v897, %v905
    %v908 = vmul.f32 %v906, 1.442695
    %v909 = vpow.pop %v908
    %v910 = vmul.f32 %v907, 1.442695
    %v911 = vpow.pop %v910
    %v912 = vsel %vm423, %v909, 0.0
    %913 = vadd.xlane.f32.xlu0 %v912
    %v914 = vpop.xlane.xlu0 %913
    %v915 = vsel %vm423, %v911, 0.0
    %916 = vadd.xlane.f32.xlu0 %v915
    %v917 = vpop.xlane.xlu0 %916
    %919 = vrot.lane.b32.xlu0 %v409, 120
    %v920 = vpop.permute.xlu0 %919
    %v923 = vsel %vm423, %v909, 0
    %925 = vmatprep.subr.mxu0 0.0
    %926 = vmatpush1.msra.mxu0 0.0
    %927 = vmatprep.subr.mxu0 0.0
    %928 = vmatpush1.msra.mxu0 0.0
    %929 = vmatprep.subr.mxu0 0.0
    %930 = vmatpush1.msra.mxu0 0.0
    %931 = vmatprep.subr.mxu0 0.0
    %932 = vmatpush1.msra.mxu0 0.0
    %933 = vmatprep.subr.mxu0 0.0
    %934 = vmatpush1.msra.mxu0 0.0
    %935 = vmatprep.subr.mxu0 0.0
    %936 = vmatpush1.msra.mxu0 0.0
    %937 = vmatprep.subr.mxu0 0.0
    %938 = vmatpush1.msra.mxu0 0.0
    %939 = vmatprep.subr.mxu0 0.0
    %940 = vmatpush1.msra.mxu0 0.0
    %941 = vmatprep.subr.mxu0 0.0
    %942 = vmatpush1.msra.mxu0 0.0
    %943 = vmatprep.subr.mxu0 0.0
    %944 = vmatpush1.msra.mxu0 0.0
    %945 = vmatprep.subr.mxu0 0.0
    %946 = vmatpush1.msra.mxu0 0.0
    %947 = vmatprep.subr.mxu0 0.0
    %948 = vmatpush1.msra.mxu0 0.0
    %949 = vmatprep.subr.mxu0 0.0
    %950 = vmatpush1.msra.mxu0 0.0
    %951 = vmatprep.subr.mxu0 0.0
    %952 = vmatpush1.msra.mxu0 0.0
    %953 = vmatprep.subr.mxu0 0.0
    %954 = vmatpush1.msra.mxu0 0.0
    %955 = vmatprep.subr.mxu0 0.0
    %956 = vmatpush1.msra.mxu0 %v920
    %957 = vmatprep.subr.mxu0 0.0
    %958 = vmatpush2.msra.mxu0 0.0
    %959 = vmatprep.subr.mxu0 0.0
    %960 = vmatpush2.msra.mxu0 0.0
    %961 = vmatprep.subr.mxu0 0.0
    %962 = vmatpush2.msra.mxu0 0.0
    %963 = vmatprep.subr.mxu0 0.0
    %964 = vmatpush2.msra.mxu0 0.0
    %965 = vmatprep.subr.mxu0 0.0
    %966 = vmatpush2.msra.mxu0 0.0
    %967 = vmatprep.subr.mxu0 0.0
    %968 = vmatpush2.msra.mxu0 0.0
    %969 = vmatprep.subr.mxu0 0.0
    %970 = vmatpush2.msra.mxu0 0.0
    %971 = vmatprep.subr.mxu0 0.0
    %972 = vmatpush2.msra.mxu0 0.0
    %973 = vmatprep.subr.mxu0 0.0
    %974 = vmatpush2.msra.mxu0 0.0
    %975 = vmatprep.subr.mxu0 0.0
    %976 = vmatpush2.msra.mxu0 0.0
    %977 = vmatprep.subr.mxu0 0.0
    %978 = vmatpush2.msra.mxu0 0.0
    %979 = vmatprep.subr.mxu0 0.0
    %980 = vmatpush2.msra.mxu0 0.0
    %981 = vmatprep.subr.mxu0 0.0
    %982 = vmatpush2.msra.mxu0 0.0
    %983 = vmatprep.subr.mxu0 0.0
    %984 = vmatpush2.msra.mxu0 0.0
    %985 = vmatprep.subr.mxu0 0.0
    %986 = vmatpush2.msra.mxu0 0.0
    %987 = vmatprep.subr.mxu0 0.0
    %988 = vmatpush2.msra.mxu0 0.0
    %989 = vmatprep.mubr.f32.mxu0 0.0
    %990 = vmatmul.mubr.f32.gmra.mxu0 %v923
    %v991 = vpop.f32.mrf.mxu0
    %v992 = vadd.f32 0.0, %v991
    %v993 = vpop.f32.mrf.mxu0
    %994 = vdwg.mxu0
    %996 = vrot.lane.b32.xlu0 %v414, 120
    %v997 = vpop.permute.xlu0 %996
    %v1000 = vsel %vm423, %v911, 0
    %1002 = vmatprep.subr.mxu0 0.0
    %1003 = vmatpush1.msra.mxu0 0.0
    %1004 = vmatprep.subr.mxu0 0.0
    %1005 = vmatpush1.msra.mxu0 0.0
    %1006 = vmatprep.subr.mxu0 0.0
    %1007 = vmatpush1.msra.mxu0 0.0
    %1008 = vmatprep.subr.mxu0 0.0
    %1009 = vmatpush1.msra.mxu0 0.0
    %1010 = vmatprep.subr.mxu0 0.0
    %1011 = vmatpush1.msra.mxu0 0.0
    %1012 = vmatprep.subr.mxu0 0.0
    %1013 = vmatpush1.msra.mxu0 0.0
    %1014 = vmatprep.subr.mxu0 0.0
    %1015 = vmatpush1.msra.mxu0 0.0
    %1016 = vmatprep.subr.mxu0 0.0
    %1017 = vmatpush1.msra.mxu0 0.0
    %1018 = vmatprep.subr.mxu0 0.0
    %1019 = vmatpush1.msra.mxu0 0.0
    %1020 = vmatprep.subr.mxu0 0.0
    %1021 = vmatpush1.msra.mxu0 0.0
    %1022 = vmatprep.subr.mxu0 0.0
    %1023 = vmatpush1.msra.mxu0 0.0
    %1024 = vmatprep.subr.mxu0 0.0
    %1025 = vmatpush1.msra.mxu0 0.0
    %1026 = vmatprep.subr.mxu0 0.0
    %1027 = vmatpush1.msra.mxu0 0.0
    %1028 = vmatprep.subr.mxu0 0.0
    %1029 = vmatpush1.msra.mxu0 0.0
    %1030 = vmatprep.subr.mxu0 0.0
    %1031 = vmatpush1.msra.mxu0 0.0
    %1032 = vmatprep.subr.mxu0 0.0
    %1033 = vmatpush1.msra.mxu0 %v997
    %1034 = vmatprep.subr.mxu0 0.0
    %1035 = vmatpush2.msra.mxu0 0.0
    %1036 = vmatprep.subr.mxu0 0.0
    %1037 = vmatpush2.msra.mxu0 0.0
    %1038 = vmatprep.subr.mxu0 0.0
    %1039 = vmatpush2.msra.mxu0 0.0
    %1040 = vmatprep.subr.mxu0 0.0
    %1041 = vmatpush2.msra.mxu0 0.0
    %1042 = vmatprep.subr.mxu0 0.0
    %1043 = vmatpush2.msra.mxu0 0.0
    %1044 = vmatprep.subr.mxu0 0.0
    %1045 = vmatpush2.msra.mxu0 0.0
    %1046 = vmatprep.subr.mxu0 0.0
    %1047 = vmatpush2.msra.mxu0 0.0
    %1048 = vmatprep.subr.mxu0 0.0
    %1049 = vmatpush2.msra.mxu0 0.0
    %1050 = vmatprep.subr.mxu0 0.0
    %1051 = vmatpush2.msra.mxu0 0.0
    %1052 = vmatprep.subr.mxu0 0.0
    %1053 = vmatpush2.msra.mxu0 0.0
    %1054 = vmatprep.subr.mxu0 0.0
    %1055 = vmatpush2.msra.mxu0 0.0
    %1056 = vmatprep.subr.mxu0 0.0
    %1057 = vmatpush2.msra.mxu0 0.0
    %1058 = vmatprep.subr.mxu0 0.0
    %1059 = vmatpush2.msra.mxu0 0.0
    %1060 = vmatprep.subr.mxu0 0.0
    %1061 = vmatpush2.msra.mxu0 0.0
    %1062 = vmatprep.subr.mxu0 0.0
    %1063 = vmatpush2.msra.mxu0 0.0
    %1064 = vmatprep.subr.mxu0 0.0
    %1065 = vmatpush2.msra.mxu0 0.0
    %1066 = vmatprep.mubr.f32.mxu0 0.0
    %1067 = vmatmul.mubr.f32.gmra.mxu0 %v1000
    %v1068 = vpop.f32.mrf.mxu0
    %v1069 = vadd.f32 0.0, %v1068
    %v1070 = vpop.f32.mrf.mxu0
    %1071 = vdwg.mxu0
    %v1072 = vrcp.pop %v914
    %v1073 = vrcp.pop %v917
    %v1074 = vmul.f32 %v992, %v1072
    %v1075 = vmul.f32 %v1069, %v1073
    %1076 = vrot.lane.b32.xlu0 %v225, 112
    %v1077 = vpop.permute.xlu0 %1076
    %1078 = vrot.lane.b32.xlu0 %v317, 112
    %v1079 = vpop.permute.xlu0 %1078
    %v1080 = vsel %vm423, %v1077, 0
    %v1082 = vsel %vm423, %v1079, 0
    %1084 = vmatprep.subr.mxu0 0.0
    %1085 = vmatpush1.xpose.msra.mxu0 0.0
    %1086 = vmatprep.subr.mxu0 0.0
    %1087 = vmatpush1.xpose.msra.mxu0 0.0
    %1088 = vmatprep.subr.mxu0 0.0
    %1089 = vmatpush1.xpose.msra.mxu0 0.0
    %1090 = vmatprep.subr.mxu0 0.0
    %1091 = vmatpush1.xpose.msra.mxu0 0.0
    %1092 = vmatprep.subr.mxu0 0.0
    %1093 = vmatpush1.xpose.msra.mxu0 0.0
    %1094 = vmatprep.subr.mxu0 0.0
    %1095 = vmatpush1.xpose.msra.mxu0 0.0
    %1096 = vmatprep.subr.mxu0 0.0
    %1097 = vmatpush1.xpose.msra.mxu0 0.0
    %1098 = vmatprep.subr.mxu0 0.0
    %1099 = vmatpush1.xpose.msra.mxu0 0.0
    %1100 = vmatprep.subr.mxu0 0.0
    %1101 = vmatpush1.xpose.msra.mxu0 0.0
    %1102 = vmatprep.subr.mxu0 0.0
    %1103 = vmatpush1.xpose.msra.mxu0 0.0
    %1104 = vmatprep.subr.mxu0 0.0
    %1105 = vmatpush1.xpose.msra.mxu0 0.0
    %1106 = vmatprep.subr.mxu0 0.0
    %1107 = vmatpush1.xpose.msra.mxu0 0.0
    %1108 = vmatprep.subr.mxu0 0.0
    %1109 = vmatpush1.xpose.msra.mxu0 0.0
    %1110 = vmatprep.subr.mxu0 0.0
    %1111 = vmatpush1.xpose.msra.mxu0 0.0
    %1112 = vmatprep.subr.mxu0 0.0
    %1113 = vmatpush1.xpose.msra.mxu0 0.0
    %1114 = vmatprep.subr.mxu0 0.0
    %1115 = vmatpush1.xpose.msra.mxu0 %v1082
    %1116 = vmatprep.subr.mxu0 0.0
    %1117 = vmatpush2.xpose.msra.mxu0 0.0
    %1118 = vmatprep.subr.mxu0 0.0
    %1119 = vmatpush2.xpose.msra.mxu0 0.0
    %1120 = vmatprep.subr.mxu0 0.0
    %1121 = vmatpush2.xpose.msra.mxu0 0.0
    %1122 = vmatprep.subr.mxu0 0.0
    %1123 = vmatpush2.xpose.msra.mxu0 0.0
    %1124 = vmatprep.subr.mxu0 0.0
    %1125 = vmatpush2.xpose.msra.mxu0 0.0
    %1126 = vmatprep.subr.mxu0 0.0
    %1127 = vmatpush2.xpose.msra.mxu0 0.0
    %1128 = vmatprep.subr.mxu0 0.0
    %1129 = vmatpush2.xpose.msra.mxu0 0.0
    %1130 = vmatprep.subr.mxu0 0.0
    %1131 = vmatpush2.xpose.msra.mxu0 0.0
    %1132 = vmatprep.subr.mxu0 0.0
    %1133 = vmatpush2.xpose.msra.mxu0 0.0
    %1134 = vmatprep.subr.mxu0 0.0
    %1135 = vmatpush2.xpose.msra.mxu0 0.0
    %1136 = vmatprep.subr.mxu0 0.0
    %1137 = vmatpush2.xpose.msra.mxu0 0.0
    %1138 = vmatprep.subr.mxu0 0.0
    %1139 = vmatpush2.xpose.msra.mxu0 0.0
    %1140 = vmatprep.subr.mxu0 0.0
    %1141 = vmatpush2.xpose.msra.mxu0 0.0
    %1142 = vmatprep.subr.mxu0 0.0
    %1143 = vmatpush2.xpose.msra.mxu0 0.0
    %1144 = vmatprep.subr.mxu0 0.0
    %1145 = vmatpush2.xpose.msra.mxu0 0.0
    %1146 = vmatprep.subr.mxu0 0.0
    %1147 = vmatpush2.xpose.msra.mxu0 0.0
    %1148 = vmatprep.mubr.f32.mxu0 0.0
    %1149 = vmatmul.mubr.f32.gmra.mxu0 %v1080
    %v1150 = vpop.f32.mrf.mxu0
    %v1151 = vadd.f32 %v422, %v1150
    %v1152 = vpop.f32.mrf.mxu0
    %1153 = vdwg.mxu0
    %1154 = vrot.lane.b32.xlu0 %v230, 112
    %v1155 = vpop.permute.xlu0 %1154
    %1156 = vrot.lane.b32.xlu0 %v322, 112
    %v1157 = vpop.permute.xlu0 %1156
    %v1158 = vsel %vm423, %v1155, 0
    %v1160 = vsel %vm423, %v1157, 0
    %1162 = vmatprep.subr.mxu0 0.0
    %1163 = vmatpush1.xpose.msra.mxu0 0.0
    %1164 = vmatprep.subr.mxu0 0.0
    %1165 = vmatpush1.xpose.msra.mxu0 0.0
    %1166 = vmatprep.subr.mxu0 0.0
    %1167 = vmatpush1.xpose.msra.mxu0 0.0
    %1168 = vmatprep.subr.mxu0 0.0
    %1169 = vmatpush1.xpose.msra.mxu0 0.0
    %1170 = vmatprep.subr.mxu0 0.0
    %1171 = vmatpush1.xpose.msra.mxu0 0.0
    %1172 = vmatprep.subr.mxu0 0.0
    %1173 = vmatpush1.xpose.msra.mxu0 0.0
    %1174 = vmatprep.subr.mxu0 0.0
    %1175 = vmatpush1.xpose.msra.mxu0 0.0
    %1176 = vmatprep.subr.mxu0 0.0
    %1177 = vmatpush1.xpose.msra.mxu0 0.0
    %1178 = vmatprep.subr.mxu0 0.0
    %1179 = vmatpush1.xpose.msra.mxu0 0.0
    %1180 = vmatprep.subr.mxu0 0.0
    %1181 = vmatpush1.xpose.msra.mxu0 0.0
    %1182 = vmatprep.subr.mxu0 0.0
    %1183 = vmatpush1.xpose.msra.mxu0 0.0
    %1184 = vmatprep.subr.mxu0 0.0
    %1185 = vmatpush1.xpose.msra.mxu0 0.0
    %1186 = vmatprep.subr.mxu0 0.0
    %1187 = vmatpush1.xpose.msra.mxu0 0.0
    %1188 = vmatprep.subr.mxu0 0.0
    %1189 = vmatpush1.xpose.msra.mxu0 0.0
    %1190 = vmatprep.subr.mxu0 0.0
    %1191 = vmatpush1.xpose.msra.mxu0 0.0
    %1192 = vmatprep.subr.mxu0 0.0
    %1193 = vmatpush1.xpose.msra.mxu0 %v1160
    %1194 = vmatprep.subr.mxu0 0.0
    %1195 = vmatpush2.xpose.msra.mxu0 0.0
    %1196 = vmatprep.subr.mxu0 0.0
    %1197 = vmatpush2.xpose.msra.mxu0 0.0
    %1198 = vmatprep.subr.mxu0 0.0
    %1199 = vmatpush2.xpose.msra.mxu0 0.0
    %1200 = vmatprep.subr.mxu0 0.0
    %1201 = vmatpush2.xpose.msra.mxu0 0.0
    %1202 = vmatprep.subr.mxu0 0.0
    %1203 = vmatpush2.xpose.msra.mxu0 0.0
    %1204 = vmatprep.subr.mxu0 0.0
    %1205 = vmatpush2.xpose.msra.mxu0 0.0
    %1206 = vmatprep.subr.mxu0 0.0
    %1207 = vmatpush2.xpose.msra.mxu0 0.0
    %1208 = vmatprep.subr.mxu0 0.0
    %1209 = vmatpush2.xpose.msra.mxu0 0.0
    %1210 = vmatprep.subr.mxu0 0.0
    %1211 = vmatpush2.xpose.msra.mxu0 0.0
    %1212 = vmatprep.subr.mxu0 0.0
    %1213 = vmatpush2.xpose.msra.mxu0 0.0
    %1214 = vmatprep.subr.mxu0 0.0
    %1215 = vmatpush2.xpose.msra.mxu0 0.0
    %1216 = vmatprep.subr.mxu0 0.0
    %1217 = vmatpush2.xpose.msra.mxu0 0.0
    %1218 = vmatprep.subr.mxu0 0.0
    %1219 = vmatpush2.xpose.msra.mxu0 0.0
    %1220 = vmatprep.subr.mxu0 0.0
    %1221 = vmatpush2.xpose.msra.mxu0 0.0
    %1222 = vmatprep.subr.mxu0 0.0
    %1223 = vmatpush2.xpose.msra.mxu0 0.0
    %1224 = vmatprep.subr.mxu0 0.0
    %1225 = vmatpush2.xpose.msra.mxu0 0.0
    %1226 = vmatprep.mubr.f32.mxu0 0.0
    %1227 = vmatmul.mubr.f32.gmra.mxu0 %v1158
    %v1228 = vpop.f32.mrf.mxu0
    %v1229 = vadd.f32 %v422, %v1228
    %v1230 = vpop.f32.mrf.mxu0
    %1231 = vdwg.mxu0
    %v1232 = vsel %vm423, %v1151, -inf
    %1233 = vmax.xlane.f32.xlu0 %v1232
    %v1234 = vpop.xlane.xlu0 %1233
    %v1235 = vsel %vm423, %v1229, -inf
    %1236 = vmax.xlane.f32.xlu0 %v1235
    %v1237 = vpop.xlane.xlu0 %1236
    %v1238 = vsub.f32 %v1151, %v1234
    %v1239 = vsub.f32 %v1229, %v1237
    %v1240 = vmul.f32 %v1238, 1.442695
    %v1241 = vpow.pop %v1240
    %v1242 = vmul.f32 %v1239, 1.442695
    %v1243 = vpow.pop %v1242
    %v1244 = vsel %vm423, %v1241, 0.0
    %1245 = vadd.xlane.f32.xlu0 %v1244
    %v1246 = vpop.xlane.xlu0 %1245
    %v1247 = vsel %vm423, %v1243, 0.0
    %1248 = vadd.xlane.f32.xlu0 %v1247
    %v1249 = vpop.xlane.xlu0 %1248
    %1250 = vrot.lane.b32.xlu0 %v409, 112
    %v1251 = vpop.permute.xlu0 %1250
    %v1254 = vsel %vm423, %v1241, 0
    %1256 = vmatprep.subr.mxu0 0.0
    %1257 = vmatpush1.msra.mxu0 0.0
    %1258 = vmatprep.subr.mxu0 0.0
    %1259 = vmatpush1.msra.mxu0 0.0
    %1260 = vmatprep.subr.mxu0 0.0
    %1261 = vmatpush1.msra.mxu0 0.0
    %1262 = vmatprep.subr.mxu0 0.0
    %1263 = vmatpush1.msra.mxu0 0.0
    %1264 = vmatprep.subr.mxu0 0.0
    %1265 = vmatpush1.msra.mxu0 0.0
    %1266 = vmatprep.subr.mxu0 0.0
    %1267 = vmatpush1.msra.mxu0 0.0
    %1268 = vmatprep.subr.mxu0 0.0
    %1269 = vmatpush1.msra.mxu0 0.0
    %1270 = vmatprep.subr.mxu0 0.0
    %1271 = vmatpush1.msra.mxu0 0.0
    %1272 = vmatprep.subr.mxu0 0.0
    %1273 = vmatpush1.msra.mxu0 0.0
    %1274 = vmatprep.subr.mxu0 0.0
    %1275 = vmatpush1.msra.mxu0 0.0
    %1276 = vmatprep.subr.mxu0 0.0
    %1277 = vmatpush1.msra.mxu0 0.0
    %1278 = vmatprep.subr.mxu0 0.0
    %1279 = vmatpush1.msra.mxu0 0.0
    %1280 = vmatprep.subr.mxu0 0.0
    %1281 = vmatpush1.msra.mxu0 0.0
    %1282 = vmatprep.subr.mxu0 0.0
    %1283 = vmatpush1.msra.mxu0 0.0
    %1284 = vmatprep.subr.mxu0 0.0
    %1285 = vmatpush1.msra.mxu0 0.0
    %1286 = vmatprep.subr.mxu0 0.0
    %1287 = vmatpush1.msra.mxu0 %v1251
    %1288 = vmatprep.subr.mxu0 0.0
    %1289 = vmatpush2.msra.mxu0 0.0
    %1290 = vmatprep.subr.mxu0 0.0
    %1291 = vmatpush2.msra.mxu0 0.0
    %1292 = vmatprep.subr.mxu0 0.0
    %1293 = vmatpush2.msra.mxu0 0.0
    %1294 = vmatprep.subr.mxu0 0.0
    %1295 = vmatpush2.msra.mxu0 0.0
    %1296 = vmatprep.subr.mxu0 0.0
    %1297 = vmatpush2.msra.mxu0 0.0
    %1298 = vmatprep.subr.mxu0 0.0
    %1299 = vmatpush2.msra.mxu0 0.0
    %1300 = vmatprep.subr.mxu0 0.0
    %1301 = vmatpush2.msra.mxu0 0.0
    %1302 = vmatprep.subr.mxu0 0.0
    %1303 = vmatpush2.msra.mxu0 0.0
    %1304 = vmatprep.subr.mxu0 0.0
    %1305 = vmatpush2.msra.mxu0 0.0
    %1306 = vmatprep.subr.mxu0 0.0
    %1307 = vmatpush2.msra.mxu0 0.0
    %1308 = vmatprep.subr.mxu0 0.0
    %1309 = vmatpush2.msra.mxu0 0.0
    %1310 = vmatprep.subr.mxu0 0.0
    %1311 = vmatpush2.msra.mxu0 0.0
    %1312 = vmatprep.subr.mxu0 0.0
    %1313 = vmatpush2.msra.mxu0 0.0
    %1314 = vmatprep.subr.mxu0 0.0
    %1315 = vmatpush2.msra.mxu0 0.0
    %1316 = vmatprep.subr.mxu0 0.0
    %1317 = vmatpush2.msra.mxu0 0.0
    %1318 = vmatprep.subr.mxu0 0.0
    %1319 = vmatpush2.msra.mxu0 0.0
    %1320 = vmatprep.mubr.f32.mxu0 0.0
    %1321 = vmatmul.mubr.f32.gmra.mxu0 %v1254
    %v1322 = vpop.f32.mrf.mxu0
    %v1323 = vadd.f32 0.0, %v1322
    %v1324 = vpop.f32.mrf.mxu0
    %1325 = vdwg.mxu0
    %1326 = vrot.lane.b32.xlu0 %v414, 112
    %v1327 = vpop.permute.xlu0 %1326
    %v1330 = vsel %vm423, %v1243, 0
    %1332 = vmatprep.subr.mxu0 0.0
    %1333 = vmatpush1.msra.mxu0 0.0
    %1334 = vmatprep.subr.mxu0 0.0
    %1335 = vmatpush1.msra.mxu0 0.0
    %1336 = vmatprep.subr.mxu0 0.0
    %1337 = vmatpush1.msra.mxu0 0.0
    %1338 = vmatprep.subr.mxu0 0.0
    %1339 = vmatpush1.msra.mxu0 0.0
    %1340 = vmatprep.subr.mxu0 0.0
    %1341 = vmatpush1.msra.mxu0 0.0
    %1342 = vmatprep.subr.mxu0 0.0
    %1343 = vmatpush1.msra.mxu0 0.0
    %1344 = vmatprep.subr.mxu0 0.0
    %1345 = vmatpush1.msra.mxu0 0.0
    %1346 = vmatprep.subr.mxu0 0.0
    %1347 = vmatpush1.msra.mxu0 0.0
    %1348 = vmatprep.subr.mxu0 0.0
    %1349 = vmatpush1.msra.mxu0 0.0
    %1350 = vmatprep.subr.mxu0 0.0
    %1351 = vmatpush1.msra.mxu0 0.0
    %1352 = vmatprep.subr.mxu0 0.0
    %1353 = vmatpush1.msra.mxu0 0.0
    %1354 = vmatprep.subr.mxu0 0.0
    %1355 = vmatpush1.msra.mxu0 0.0
    %1356 = vmatprep.subr.mxu0 0.0
    %1357 = vmatpush1.msra.mxu0 0.0
    %1358 = vmatprep.subr.mxu0 0.0
    %1359 = vmatpush1.msra.mxu0 0.0
    %1360 = vmatprep.subr.mxu0 0.0
    %1361 = vmatpush1.msra.mxu0 0.0
    %1362 = vmatprep.subr.mxu0 0.0
    %1363 = vmatpush1.msra.mxu0 %v1327
    %1364 = vmatprep.subr.mxu0 0.0
    %1365 = vmatpush2.msra.mxu0 0.0
    %1366 = vmatprep.subr.mxu0 0.0
    %1367 = vmatpush2.msra.mxu0 0.0
    %1368 = vmatprep.subr.mxu0 0.0
    %1369 = vmatpush2.msra.mxu0 0.0
    %1370 = vmatprep.subr.mxu0 0.0
    %1371 = vmatpush2.msra.mxu0 0.0
    %1372 = vmatprep.subr.mxu0 0.0
    %1373 = vmatpush2.msra.mxu0 0.0
    %1374 = vmatprep.subr.mxu0 0.0
    %1375 = vmatpush2.msra.mxu0 0.0
    %1376 = vmatprep.subr.mxu0 0.0
    %1377 = vmatpush2.msra.mxu0 0.0
    %1378 = vmatprep.subr.mxu0 0.0
    %1379 = vmatpush2.msra.mxu0 0.0
    %1380 = vmatprep.subr.mxu0 0.0
    %1381 = vmatpush2.msra.mxu0 0.0
    %1382 = vmatprep.subr.mxu0 0.0
    %1383 = vmatpush2.msra.mxu0 0.0
    %1384 = vmatprep.subr.mxu0 0.0
    %1385 = vmatpush2.msra.mxu0 0.0
    %1386 = vmatprep.subr.mxu0 0.0
    %1387 = vmatpush2.msra.mxu0 0.0
    %1388 = vmatprep.subr.mxu0 0.0
    %1389 = vmatpush2.msra.mxu0 0.0
    %1390 = vmatprep.subr.mxu0 0.0
    %1391 = vmatpush2.msra.mxu0 0.0
    %1392 = vmatprep.subr.mxu0 0.0
    %1393 = vmatpush2.msra.mxu0 0.0
    %1394 = vmatprep.subr.mxu0 0.0
    %1395 = vmatpush2.msra.mxu0 0.0
    %1396 = vmatprep.mubr.f32.mxu0 0.0
    %1397 = vmatmul.mubr.f32.gmra.mxu0 %v1330
    %v1398 = vpop.f32.mrf.mxu0
    %v1399 = vadd.f32 0.0, %v1398
    %v1400 = vpop.f32.mrf.mxu0
    %1401 = vdwg.mxu0
    %v1402 = vrcp.pop %v1246
    %v1403 = vrcp.pop %v1249
    %v1404 = vmul.f32 %v1323, %v1402
    %v1405 = vmul.f32 %v1399, %v1403
    %1406 = vrot.lane.b32.xlu0 %v225, 104
    %v1407 = vpop.permute.xlu0 %1406
    %1408 = vrot.lane.b32.xlu0 %v317, 104
    %v1409 = vpop.permute.xlu0 %1408
    %v1410 = vsel %vm423, %v1407, 0
    %v1412 = vsel %vm423, %v1409, 0
    %1414 = vmatprep.subr.mxu0 0.0
    %1415 = vmatpush1.xpose.msra.mxu0 0.0
    %1416 = vmatprep.subr.mxu0 0.0
    %1417 = vmatpush1.xpose.msra.mxu0 0.0
    %1418 = vmatprep.subr.mxu0 0.0
    %1419 = vmatpush1.xpose.msra.mxu0 0.0
    %1420 = vmatprep.subr.mxu0 0.0
    %1421 = vmatpush1.xpose.msra.mxu0 0.0
    %1422 = vmatprep.subr.mxu0 0.0
    %1423 = vmatpush1.xpose.msra.mxu0 0.0
    %1424 = vmatprep.subr.mxu0 0.0
    %1425 = vmatpush1.xpose.msra.mxu0 0.0
    %1426 = vmatprep.subr.mxu0 0.0
    %1427 = vmatpush1.xpose.msra.mxu0 0.0
    %1428 = vmatprep.subr.mxu0 0.0
    %1429 = vmatpush1.xpose.msra.mxu0 0.0
    %1430 = vmatprep.subr.mxu0 0.0
    %1431 = vmatpush1.xpose.msra.mxu0 0.0
    %1432 = vmatprep.subr.mxu0 0.0
    %1433 = vmatpush1.xpose.msra.mxu0 0.0
    %1434 = vmatprep.subr.mxu0 0.0
    %1435 = vmatpush1.xpose.msra.mxu0 0.0
    %1436 = vmatprep.subr.mxu0 0.0
    %1437 = vmatpush1.xpose.msra.mxu0 0.0
    %1438 = vmatprep.subr.mxu0 0.0
    %1439 = vmatpush1.xpose.msra.mxu0 0.0
    %1440 = vmatprep.subr.mxu0 0.0
    %1441 = vmatpush1.xpose.msra.mxu0 0.0
    %1442 = vmatprep.subr.mxu0 0.0
    %1443 = vmatpush1.xpose.msra.mxu0 0.0
    %1444 = vmatprep.subr.mxu0 0.0
    %1445 = vmatpush1.xpose.msra.mxu0 %v1412
    %1446 = vmatprep.subr.mxu0 0.0
    %1447 = vmatpush2.xpose.msra.mxu0 0.0
    %1448 = vmatprep.subr.mxu0 0.0
    %1449 = vmatpush2.xpose.msra.mxu0 0.0
    %1450 = vmatprep.subr.mxu0 0.0
    %1451 = vmatpush2.xpose.msra.mxu0 0.0
    %1452 = vmatprep.subr.mxu0 0.0
    %1453 = vmatpush2.xpose.msra.mxu0 0.0
    %1454 = vmatprep.subr.mxu0 0.0
    %1455 = vmatpush2.xpose.msra.mxu0 0.0
    %1456 = vmatprep.subr.mxu0 0.0
    %1457 = vmatpush2.xpose.msra.mxu0 0.0
    %1458 = vmatprep.subr.mxu0 0.0
    %1459 = vmatpush2.xpose.msra.mxu0 0.0
    %1460 = vmatprep.subr.mxu0 0.0
    %1461 = vmatpush2.xpose.msra.mxu0 0.0
    %1462 = vmatprep.subr.mxu0 0.0
    %1463 = vmatpush2.xpose.msra.mxu0 0.0
    %1464 = vmatprep.subr.mxu0 0.0
    %1465 = vmatpush2.xpose.msra.mxu0 0.0
    %1466 = vmatprep.subr.mxu0 0.0
    %1467 = vmatpush2.xpose.msra.mxu0 0.0
    %1468 = vmatprep.subr.mxu0 0.0
    %1469 = vmatpush2.xpose.msra.mxu0 0.0
    %1470 = vmatprep.subr.mxu0 0.0
    %1471 = vmatpush2.xpose.msra.mxu0 0.0
    %1472 = vmatprep.subr.mxu0 0.0
    %1473 = vmatpush2.xpose.msra.mxu0 0.0
    %1474 = vmatprep.subr.mxu0 0.0
    %1475 = vmatpush2.xpose.msra.mxu0 0.0
    %1476 = vmatprep.subr.mxu0 0.0
    %1477 = vmatpush2.xpose.msra.mxu0 0.0
    %1478 = vmatprep.mubr.f32.mxu0 0.0
    %1479 = vmatmul.mubr.f32.gmra.mxu0 %v1410
    %v1480 = vpop.f32.mrf.mxu0
    %v1481 = vadd.f32 %v422, %v1480
    %v1482 = vpop.f32.mrf.mxu0
    %1483 = vdwg.mxu0
    %1484 = vrot.lane.b32.xlu0 %v230, 104
    %v1485 = vpop.permute.xlu0 %1484
    %1486 = vrot.lane.b32.xlu0 %v322, 104
    %v1487 = vpop.permute.xlu0 %1486
    %v1488 = vsel %vm423, %v1485, 0
    %v1490 = vsel %vm423, %v1487, 0
    %1492 = vmatprep.subr.mxu0 0.0
    %1493 = vmatpush1.xpose.msra.mxu0 0.0
    %1494 = vmatprep.subr.mxu0 0.0
    %1495 = vmatpush1.xpose.msra.mxu0 0.0
    %1496 = vmatprep.subr.mxu0 0.0
    %1497 = vmatpush1.xpose.msra.mxu0 0.0
    %1498 = vmatprep.subr.mxu0 0.0
    %1499 = vmatpush1.xpose.msra.mxu0 0.0
    %1500 = vmatprep.subr.mxu0 0.0
    %1501 = vmatpush1.xpose.msra.mxu0 0.0
    %1502 = vmatprep.subr.mxu0 0.0
    %1503 = vmatpush1.xpose.msra.mxu0 0.0
    %1504 = vmatprep.subr.mxu0 0.0
    %1505 = vmatpush1.xpose.msra.mxu0 0.0
    %1506 = vmatprep.subr.mxu0 0.0
    %1507 = vmatpush1.xpose.msra.mxu0 0.0
    %1508 = vmatprep.subr.mxu0 0.0
    %1509 = vmatpush1.xpose.msra.mxu0 0.0
    %1510 = vmatprep.subr.mxu0 0.0
    %1511 = vmatpush1.xpose.msra.mxu0 0.0
    %1512 = vmatprep.subr.mxu0 0.0
    %1513 = vmatpush1.xpose.msra.mxu0 0.0
    %1514 = vmatprep.subr.mxu0 0.0
    %1515 = vmatpush1.xpose.msra.mxu0 0.0
    %1516 = vmatprep.subr.mxu0 0.0
    %1517 = vmatpush1.xpose.msra.mxu0 0.0
    %1518 = vmatprep.subr.mxu0 0.0
    %1519 = vmatpush1.xpose.msra.mxu0 0.0
    %1520 = vmatprep.subr.mxu0 0.0
    %1521 = vmatpush1.xpose.msra.mxu0 0.0
    %1522 = vmatprep.subr.mxu0 0.0
    %1523 = vmatpush1.xpose.msra.mxu0 %v1490
    %1524 = vmatprep.subr.mxu0 0.0
    %1525 = vmatpush2.xpose.msra.mxu0 0.0
    %1526 = vmatprep.subr.mxu0 0.0
    %1527 = vmatpush2.xpose.msra.mxu0 0.0
    %1528 = vmatprep.subr.mxu0 0.0
    %1529 = vmatpush2.xpose.msra.mxu0 0.0
    %1530 = vmatprep.subr.mxu0 0.0
    %1531 = vmatpush2.xpose.msra.mxu0 0.0
    %1532 = vmatprep.subr.mxu0 0.0
    %1533 = vmatpush2.xpose.msra.mxu0 0.0
    %1534 = vmatprep.subr.mxu0 0.0
    %1535 = vmatpush2.xpose.msra.mxu0 0.0
    %1536 = vmatprep.subr.mxu0 0.0
    %1537 = vmatpush2.xpose.msra.mxu0 0.0
    %1538 = vmatprep.subr.mxu0 0.0
    %1539 = vmatpush2.xpose.msra.mxu0 0.0
    %1540 = vmatprep.subr.mxu0 0.0
    %1541 = vmatpush2.xpose.msra.mxu0 0.0
    %1542 = vmatprep.subr.mxu0 0.0
    %1543 = vmatpush2.xpose.msra.mxu0 0.0
    %1544 = vmatprep.subr.mxu0 0.0
    %1545 = vmatpush2.xpose.msra.mxu0 0.0
    %1546 = vmatprep.subr.mxu0 0.0
    %1547 = vmatpush2.xpose.msra.mxu0 0.0
    %1548 = vmatprep.subr.mxu0 0.0
    %1549 = vmatpush2.xpose.msra.mxu0 0.0
    %1550 = vmatprep.subr.mxu0 0.0
    %1551 = vmatpush2.xpose.msra.mxu0 0.0
    %1552 = vmatprep.subr.mxu0 0.0
    %1553 = vmatpush2.xpose.msra.mxu0 0.0
    %1554 = vmatprep.subr.mxu0 0.0
    %1555 = vmatpush2.xpose.msra.mxu0 0.0
    %1556 = vmatprep.mubr.f32.mxu0 0.0
    %1557 = vmatmul.mubr.f32.gmra.mxu0 %v1488
    %v1558 = vpop.f32.mrf.mxu0
    %v1559 = vadd.f32 %v422, %v1558
    %v1560 = vpop.f32.mrf.mxu0
    %1561 = vdwg.mxu0
    %v1562 = vsel %vm423, %v1481, -inf
    %1563 = vmax.xlane.f32.xlu0 %v1562
    %v1564 = vpop.xlane.xlu0 %1563
    %v1565 = vsel %vm423, %v1559, -inf
    %1566 = vmax.xlane.f32.xlu0 %v1565
    %v1567 = vpop.xlane.xlu0 %1566
    %v1568 = vsub.f32 %v1481, %v1564
    %v1569 = vsub.f32 %v1559, %v1567
    %v1570 = vmul.f32 %v1568, 1.442695
    %v1571 = vpow.pop %v1570
    %v1572 = vmul.f32 %v1569, 1.442695
    %v1573 = vpow.pop %v1572
    %v1574 = vsel %vm423, %v1571, 0.0
    %1575 = vadd.xlane.f32.xlu0 %v1574
    %v1576 = vpop.xlane.xlu0 %1575
    %v1577 = vsel %vm423, %v1573, 0.0
    %1578 = vadd.xlane.f32.xlu0 %v1577
    %v1579 = vpop.xlane.xlu0 %1578
    %1580 = vrot.lane.b32.xlu0 %v409, 104
    %v1581 = vpop.permute.xlu0 %1580
    %v1584 = vsel %vm423, %v1571, 0
    %1586 = vmatprep.subr.mxu0 0.0
    %1587 = vmatpush1.msra.mxu0 0.0
    %1588 = vmatprep.subr.mxu0 0.0
    %1589 = vmatpush1.msra.mxu0 0.0
    %1590 = vmatprep.subr.mxu0 0.0
    %1591 = vmatpush1.msra.mxu0 0.0
    %1592 = vmatprep.subr.mxu0 0.0
    %1593 = vmatpush1.msra.mxu0 0.0
    %1594 = vmatprep.subr.mxu0 0.0
    %1595 = vmatpush1.msra.mxu0 0.0
    %1596 = vmatprep.subr.mxu0 0.0
    %1597 = vmatpush1.msra.mxu0 0.0
    %1598 = vmatprep.subr.mxu0 0.0
    %1599 = vmatpush1.msra.mxu0 0.0
    %1600 = vmatprep.subr.mxu0 0.0
    %1601 = vmatpush1.msra.mxu0 0.0
    %1602 = vmatprep.subr.mxu0 0.0
    %1603 = vmatpush1.msra.mxu0 0.0
    %1604 = vmatprep.subr.mxu0 0.0
    %1605 = vmatpush1.msra.mxu0 0.0
    %1606 = vmatprep.subr.mxu0 0.0
    %1607 = vmatpush1.msra.mxu0 0.0
    %1608 = vmatprep.subr.mxu0 0.0
    %1609 = vmatpush1.msra.mxu0 0.0
    %1610 = vmatprep.subr.mxu0 0.0
    %1611 = vmatpush1.msra.mxu0 0.0
    %1612 = vmatprep.subr.mxu0 0.0
    %1613 = vmatpush1.msra.mxu0 0.0
    %1614 = vmatprep.subr.mxu0 0.0
    %1615 = vmatpush1.msra.mxu0 0.0
    %1616 = vmatprep.subr.mxu0 0.0
    %1617 = vmatpush1.msra.mxu0 %v1581
    %1618 = vmatprep.subr.mxu0 0.0
    %1619 = vmatpush2.msra.mxu0 0.0
    %1620 = vmatprep.subr.mxu0 0.0
    %1621 = vmatpush2.msra.mxu0 0.0
    %1622 = vmatprep.subr.mxu0 0.0
    %1623 = vmatpush2.msra.mxu0 0.0
    %1624 = vmatprep.subr.mxu0 0.0
    %1625 = vmatpush2.msra.mxu0 0.0
    %1626 = vmatprep.subr.mxu0 0.0
    %1627 = vmatpush2.msra.mxu0 0.0
    %1628 = vmatprep.subr.mxu0 0.0
    %1629 = vmatpush2.msra.mxu0 0.0
    %1630 = vmatprep.subr.mxu0 0.0
    %1631 = vmatpush2.msra.mxu0 0.0
    %1632 = vmatprep.subr.mxu0 0.0
    %1633 = vmatpush2.msra.mxu0 0.0
    %1634 = vmatprep.subr.mxu0 0.0
    %1635 = vmatpush2.msra.mxu0 0.0
    %1636 = vmatprep.subr.mxu0 0.0
    %1637 = vmatpush2.msra.mxu0 0.0
    %1638 = vmatprep.subr.mxu0 0.0
    %1639 = vmatpush2.msra.mxu0 0.0
    %1640 = vmatprep.subr.mxu0 0.0
    %1641 = vmatpush2.msra.mxu0 0.0
    %1642 = vmatprep.subr.mxu0 0.0
    %1643 = vmatpush2.msra.mxu0 0.0
    %1644 = vmatprep.subr.mxu0 0.0
    %1645 = vmatpush2.msra.mxu0 0.0
    %1646 = vmatprep.subr.mxu0 0.0
    %1647 = vmatpush2.msra.mxu0 0.0
    %1648 = vmatprep.subr.mxu0 0.0
    %1649 = vmatpush2.msra.mxu0 0.0
    %1650 = vmatprep.mubr.f32.mxu0 0.0
    %1651 = vmatmul.mubr.f32.gmra.mxu0 %v1584
    %v1652 = vpop.f32.mrf.mxu0
    %v1653 = vadd.f32 0.0, %v1652
    %v1654 = vpop.f32.mrf.mxu0
    %1655 = vdwg.mxu0
    %1656 = vrot.lane.b32.xlu0 %v414, 104
    %v1657 = vpop.permute.xlu0 %1656
    %v1660 = vsel %vm423, %v1573, 0
    %1662 = vmatprep.subr.mxu0 0.0
    %1663 = vmatpush1.msra.mxu0 0.0
    %1664 = vmatprep.subr.mxu0 0.0
    %1665 = vmatpush1.msra.mxu0 0.0
    %1666 = vmatprep.subr.mxu0 0.0
    %1667 = vmatpush1.msra.mxu0 0.0
    %1668 = vmatprep.subr.mxu0 0.0
    %1669 = vmatpush1.msra.mxu0 0.0
    %1670 = vmatprep.subr.mxu0 0.0
    %1671 = vmatpush1.msra.mxu0 0.0
    %1672 = vmatprep.subr.mxu0 0.0
    %1673 = vmatpush1.msra.mxu0 0.0
    %1674 = vmatprep.subr.mxu0 0.0
    %1675 = vmatpush1.msra.mxu0 0.0
    %1676 = vmatprep.subr.mxu0 0.0
    %1677 = vmatpush1.msra.mxu0 0.0
    %1678 = vmatprep.subr.mxu0 0.0
    %1679 = vmatpush1.msra.mxu0 0.0
    %1680 = vmatprep.subr.mxu0 0.0
    %1681 = vmatpush1.msra.mxu0 0.0
    %1682 = vmatprep.subr.mxu0 0.0
    %1683 = vmatpush1.msra.mxu0 0.0
    %1684 = vmatprep.subr.mxu0 0.0
    %1685 = vmatpush1.msra.mxu0 0.0
    %1686 = vmatprep.subr.mxu0 0.0
    %1687 = vmatpush1.msra.mxu0 0.0
    %1688 = vmatprep.subr.mxu0 0.0
    %1689 = vmatpush1.msra.mxu0 0.0
    %1690 = vmatprep.subr.mxu0 0.0
    %1691 = vmatpush1.msra.mxu0 0.0
    %1692 = vmatprep.subr.mxu0 0.0
    %1693 = vmatpush1.msra.mxu0 %v1657
    %1694 = vmatprep.subr.mxu0 0.0
    %1695 = vmatpush2.msra.mxu0 0.0
    %1696 = vmatprep.subr.mxu0 0.0
    %1697 = vmatpush2.msra.mxu0 0.0
    %1698 = vmatprep.subr.mxu0 0.0
    %1699 = vmatpush2.msra.mxu0 0.0
    %1700 = vmatprep.subr.mxu0 0.0
    %1701 = vmatpush2.msra.mxu0 0.0
    %1702 = vmatprep.subr.mxu0 0.0
    %1703 = vmatpush2.msra.mxu0 0.0
    %1704 = vmatprep.subr.mxu0 0.0
    %1705 = vmatpush2.msra.mxu0 0.0
    %1706 = vmatprep.subr.mxu0 0.0
    %1707 = vmatpush2.msra.mxu0 0.0
    %1708 = vmatprep.subr.mxu0 0.0
    %1709 = vmatpush2.msra.mxu0 0.0
    %1710 = vmatprep.subr.mxu0 0.0
    %1711 = vmatpush2.msra.mxu0 0.0
    %1712 = vmatprep.subr.mxu0 0.0
    %1713 = vmatpush2.msra.mxu0 0.0
    %1714 = vmatprep.subr.mxu0 0.0
    %1715 = vmatpush2.msra.mxu0 0.0
    %1716 = vmatprep.subr.mxu0 0.0
    %1717 = vmatpush2.msra.mxu0 0.0
    %1718 = vmatprep.subr.mxu0 0.0
    %1719 = vmatpush2.msra.mxu0 0.0
    %1720 = vmatprep.subr.mxu0 0.0
    %1721 = vmatpush2.msra.mxu0 0.0
    %1722 = vmatprep.subr.mxu0 0.0
    %1723 = vmatpush2.msra.mxu0 0.0
    %1724 = vmatprep.subr.mxu0 0.0
    %1725 = vmatpush2.msra.mxu0 0.0
    %1726 = vmatprep.mubr.f32.mxu0 0.0
    %1727 = vmatmul.mubr.f32.gmra.mxu0 %v1660
    %v1728 = vpop.f32.mrf.mxu0
    %v1729 = vadd.f32 0.0, %v1728
    %v1730 = vpop.f32.mrf.mxu0
    %1731 = vdwg.mxu0
    %v1732 = vrcp.pop %v1576
    %v1733 = vrcp.pop %v1579
    %v1734 = vmul.f32 %v1653, %v1732
    %v1735 = vmul.f32 %v1729, %v1733
    %1738 = vrot.lane.b32.xlu0 %v1074, 8
    %v1739 = vpop.permute.xlu0 %1738
    %1740 = vrot.lane.b32.xlu0 %v1075, 8
    %v1741 = vpop.permute.xlu0 %1740
    %1746 = vrot.lane.b32.xlu0 %v1404, 16
    %v1747 = vpop.permute.xlu0 %1746
    %1748 = vrot.lane.b32.xlu0 %v1405, 16
    %v1749 = vpop.permute.xlu0 %1748
    %1754 = vrot.lane.b32.xlu0 %v1734, 24
    %v1755 = vpop.permute.xlu0 %1754
    %1756 = vrot.lane.b32.xlu0 %v1735, 24
    %v1757 = vpop.permute.xlu0 %1756
    %v1760 = vsel %vm423, %v742, %v1739
    %v1761 = vsel %vm423, %v743, %v1741
    %vm1762 = vcmask 130048
    %v1763 = vsel %vm1762, %v1760, %v1747
    %v1764 = vsel %vm1762, %v1761, %v1749
    %vm1765 = vcmask 195584
    %v1766 = vsel %vm1765, %v1763, %v1755
    %v1767 = vsel %vm1765, %v1764, %v1757
    %v1768 = vld [vmem:[#allocation13] sm:$0xff]
    %v1769 = vld [vmem:[#allocation13 + $0x8] sm:$0xff]
    %v1770 = vld [vmem:[#allocation13 + $0x10] sm:$0xff]
    %v1771 = vld [vmem:[#allocation13 + $0x18] sm:$0xff]
    %v1772 = vld [vmem:[%s10] sm:$0x1]
    %v1774 = vlaneseq
    %v1775 = vshrl.u32 %v1774, 7
    %v1776 = vsub.s32 0, %v1775
    %v1777 = vrot.slane %v1772, %v1776
    %v1780 = vsel %vm151, %v1766, 0
    %v1783 = vsel %vm151, %v1767, 0
    %1785 = vmatprep.subr.mxu0 0.0
    %1786 = vmatpush1.msra.mxu0 0.0
    %1787 = vmatprep.subr.mxu0 0.0
    %1788 = vmatpush1.msra.mxu0 0.0
    %1789 = vmatprep.subr.mxu0 0.0
    %1790 = vmatpush1.msra.mxu0 0.0
    %1791 = vmatprep.subr.mxu0 0.0
    %1792 = vmatpush1.msra.mxu0 0.0
    %1793 = vmatprep.subr.mxu0 0.0
    %1794 = vmatpush1.msra.mxu0 0.0
    %1795 = vmatprep.subr.mxu0 0.0
    %1796 = vmatpush1.msra.mxu0 0.0
    %1797 = vmatprep.subr.mxu0 0.0
    %1798 = vmatpush1.msra.mxu0 0.0
    %1799 = vmatprep.subr.mxu0 0.0
    %1800 = vmatpush1.msra.mxu0 0.0
    %1801 = vmatprep.subr.mxu0 0.0
    %1802 = vmatpush1.msra.mxu0 0.0
    %1803 = vmatprep.subr.mxu0 0.0
    %1804 = vmatpush1.msra.mxu0 0.0
    %1805 = vmatprep.subr.mxu0 0.0
    %1806 = vmatpush1.msra.mxu0 0.0
    %1807 = vmatprep.subr.mxu0 0.0
    %1808 = vmatpush1.msra.mxu0 0.0
    %1809 = vmatprep.subr.mxu0 0.0
    %1810 = vmatpush1.msra.mxu0 %v1771
    %1811 = vmatprep.subr.mxu0 0.0
    %1812 = vmatpush1.msra.mxu0 %v1770
    %1813 = vmatprep.subr.mxu0 0.0
    %1814 = vmatpush1.msra.mxu0 %v1769
    %1815 = vmatprep.subr.mxu0 0.0
    %1816 = vmatpush1.msra.mxu0 %v1768
    %1817 = vmatprep.subr.mxu0 0.0
    %1818 = vmatpush2.msra.mxu0 0.0
    %1819 = vmatprep.subr.mxu0 0.0
    %1820 = vmatpush2.msra.mxu0 0.0
    %1821 = vmatprep.subr.mxu0 0.0
    %1822 = vmatpush2.msra.mxu0 0.0
    %1823 = vmatprep.subr.mxu0 0.0
    %1824 = vmatpush2.msra.mxu0 0.0
    %1825 = vmatprep.subr.mxu0 0.0
    %1826 = vmatpush2.msra.mxu0 0.0
    %1827 = vmatprep.subr.mxu0 0.0
    %1828 = vmatpush2.msra.mxu0 0.0
    %1829 = vmatprep.subr.mxu0 0.0
    %1830 = vmatpush2.msra.mxu0 0.0
    %1831 = vmatprep.subr.mxu0 0.0
    %1832 = vmatpush2.msra.mxu0 0.0
    %1833 = vmatprep.subr.mxu0 0.0
    %1834 = vmatpush2.msra.mxu0 0.0
    %1835 = vmatprep.subr.mxu0 0.0
    %1836 = vmatpush2.msra.mxu0 0.0
    %1837 = vmatprep.subr.mxu0 0.0
    %1838 = vmatpush2.msra.mxu0 0.0
    %1839 = vmatprep.subr.mxu0 0.0
    %1840 = vmatpush2.msra.mxu0 0.0
    %1841 = vmatprep.subr.mxu0 0.0
    %1842 = vmatpush2.msra.mxu0 0.0
    %1843 = vmatprep.subr.mxu0 0.0
    %1844 = vmatpush2.msra.mxu0 0.0
    %1845 = vmatprep.subr.mxu0 0.0
    %1846 = vmatpush2.msra.mxu0 0.0
    %1847 = vmatprep.subr.mxu0 0.0
    %1848 = vmatpush2.msra.mxu0 0.0
    %1849 = vmatprep.mubr.f32.mxu0 0.0
    %1850 = vmatmul.mubr.f32.gmra.mxu0 %v1780
    %v1851 = vpop.f32.mrf.mxu0
    %v1852 = vadd.f32 %v1777, %v1851
    %v1853 = vpop.f32.mrf.mxu0
    %1854 = vmatprep.mubr.f32.mxu0 0.0
    %1855 = vmatmul.mubr.f32.gmra.mxu0 %v1783
    %v1856 = vpop.f32.mrf.mxu0
    %v1857 = vadd.f32 %v1777, %v1856
    %v1858 = vpop.f32.mrf.mxu0
    %1859 = vdwg.mxu0
    %1860 = vst.msk [vmem:[#allocation14] sm:$0xff] %vm151, %v1852
    %1861 = vst.msk [vmem:[#allocation14 + $0x8] sm:$0xff] %vm151, %v1857
    // Predicated region
    $region74: #{tpu_custom_call.1} parent=1 // pred_check
      _
    $region75: #{tpu_custom_call.1} parent=1 // pred_check_branch
      %1863 = sbr.rel (0) target = $region77
    $region76: #{tpu_custom_call.1} parent=1 // pred_region
      %s1865 = ssub.s32 256, 256
      %1866 = vsyncadd [#allocation4], %s1865
      %s1867 = sshll.u32 [#allocation14], 4
      %s1868 = int_to_ptr.vmem [resolvable:$true] %s1867
      %1873 = dma.vmem_to_hbm [thread:$0]  %s1868, 256, %s11, [#allocation4], 128, 128, 8
    $region77: #{tpu_custom_call.1} parent=1 // pred_fallthru
      _
    // Predicated region
    $region78: #{tpu_custom_call.1} parent=1 // pred_check
      _
    $region79: #{tpu_custom_call.1} parent=1 // pred_check_branch
      %1875 = sbr.rel (0) target = $region81
    $region80: #{tpu_custom_call.1} parent=1 // pred_region
      %1876 = dma.done [#allocation4], 256
    $region81: #{tpu_custom_call.1} parent=1 // pred_fallthru
      _
    %1877 = vsyncpa [#allocation3], 1
    %1878 = vsyncpa [#allocation6], 1
    %1879 = vsyncpa [#allocation9], 1
    %1880 = vsyncpa [#allocation12], 1
    %1881 = vsyncpa [#allocation4], 1

</llo_original>
